<compile_context>
chip_gen: v7x
topology: tpu7x:2x2x1
jax: 0.10.0
libtpu: 0.0.40
codegen_flags: <defaults>
</compile_context>

<pallas_src>
import jax
import jax.numpy as jnp
from jax.experimental import pallas as pl
from jax.experimental.pallas import tpu as pltpu

ETYPES = ("cor", "sim")
DP = 128        # lane-dense padded hidden width
ATT_PAD = 128   # attention-projection columns padded to one full lane tile
OUT_PAD = 128   # lane-dense padded output width of fc_output
N_ATT = 5       # folded attention cols: node(1) e_src(1) e_dst(1) i_src(1) i_dst(1)


# ----------------------------------------------------------------------------
# small host-side helpers
# ----------------------------------------------------------------------------
def _round8(n):
    return ((n + 7) // 8) * 8


def _pad_to(x, shape):
    return jnp.pad(x, [(0, t - s) for s, t in zip(x.shape, shape)])


def _mode_spec(shape, swap=False):
    # stacked per-mode 3-D array: block over the leading (etype) axis.
    # swap=True selects the *other* etype's row of the same stacked array.
    blk = (1,) + tuple(shape[1:])
    if swap:
        return pl.BlockSpec(blk, lambda m: (1 - m, 0, 0))
    return pl.BlockSpec(blk, lambda m: (m, 0, 0))


def _shared_spec(shape):
    # 2-D array shared by both etypes (same block every grid step)
    return pl.BlockSpec(tuple(shape), lambda m: (0, 0))


def _vmem_limit_bytes():
    try:
        cap = int(pltpu.get_tpu_info().vmem_capacity_bytes)
    except Exception:
        cap = 64 * 1024 * 1024
    return (cap * 3) // 4


# ----------------------------------------------------------------------------
# fused decoupled-GAT block (runs twice inside the kernel body)
# ----------------------------------------------------------------------------
def _dec_core(z, m_mode, m_other, inv_deg, w_att, w_agg, b_agg):
    """Relationship_Decoupled_layer + One_Neighbor_Aggregation +
    Neighbor_Interaction_Aggregation for a single etype.

    z       : (Ns, DP)  f32 src features (lane-padded); dst = first Nd rows
    m_mode  : (Nd, Ns)  bf16 0/1 adjacency of the `mode` etype
    m_other : (Nd, Ns)  bf16 0/1 adjacency of the other etype
    inv_deg : (Nd, 1)   precomputed 1/in-degree of the `mode` etype
    w_att   : (DP, ATT_PAD) folded attention columns (logit diffs pre-folded)
    w_agg   : (DP, DP)  pre-transposed One_Neighbor weight (applied dst-side)
    b_agg   : (1, DP)   One_Neighbor bias
    """
    n_dst = m_mode.shape[0]
    z_dst = z[:n_dst, :]

    # single lane-dense attention projection (5 real cols, padded to 128)
    att = jnp.dot(z, w_att, preferred_element_type=jnp.float32)   # (Ns, 128)
    att_dst = att[:n_dst, :]

    # node attention: 2-class softmax == sigmoid of the pre-folded logit diff
    alpha0 = jax.nn.sigmoid(att_dst[:, 0:1])                      # (Nd, 1)
    alpha1 = 1.0 - alpha0

    mode_f = m_mode.astype(jnp.float32)
    other_f = m_other.astype(jnp.float32)

    # e-edge attention (mode etype): per-edge 2-class softmax, masked
    du = att[:, 1:2].T                                            # (1, Ns)
    dv = att_dst[:, 2:3]                                          # (Nd, 1)
    e0m = mode_f * jax.nn.sigmoid(dv + du)
    e1m = mode_f - e0m

    # i-edge attention (other etype): per-edge sigmoid, masked
    sigm = other_f * jax.nn.sigmoid(att_dst[:, 4:5] + att[:, 3:4].T)

    # one tall MXU op sharing the resident RHS z for all three aggregations
    s = jnp.dot(jnp.concatenate([e0m, e1m, sigm], axis=0), z,
                preferred_element_type=jnp.float32)               # (3*Nd, DP)
    s0 = s[:n_dst]
    e_h = s[n_dst:2 * n_dst]
    i_h = s[2 * n_dst:]

    # One_Neighbor_Aggregation: relu(mean_j e0*(W z_j + b)) + alpha0 * z_dst,
    # with W_agg moved to the (smaller) dst side:
    #   mean_j e0*(W z_j + b) = ((e0m @ z) @ W^T + rowsum(e0m)*b) * inv_deg
    f = jnp.maximum(
        (jnp.dot(s0, w_agg, preferred_element_type=jnp.float32)
         + jnp.sum(e0m, axis=1, keepdims=True) * b_agg) * inv_deg, 0.0)
    one_hop = f + alpha0 * z_dst

    # Neighbor_Interaction_Aggregation: relu(e_h * i_h) + alpha1 * z_dst
    # (0.5*((a+b)^2 - a^2 - b^2) == a*b, algebraically identical)
    nia = jnp.maximum(e_h * i_h, 0.0) + alpha1 * z_dst

    return 0.5 * (one_hop + nia)


def _decgat_kernel(feats_ref, wi_ref, bi_ref,
                   mm0_ref, mo0_ref, dinv0_ref, watt1_ref, wagg1_ref, bagg1_ref,
                   mm1_ref, mo1_ref, dinv1_ref, watt2_ref, wagg2_ref, bagg2_ref,
                   wo_ref, bo_ref, o_ref):
    # layer 1: fc_input fused into the prologue
    z0 = jnp.dot(feats_ref[...], wi_ref[0],
                 preferred_element_type=jnp.float32) + bi_ref[0]
    emb1 = _dec_core(z0, mm0_ref[0], mo0_ref[0], dinv0_ref[0],
                     watt1_ref[0], wagg1_ref[0], bagg1_ref[0])
    # layer 2 consumes emb1 straight from VMEM/vregs (no HBM round trip)
    h = _dec_core(emb1, mm1_ref[0], mo1_ref[0], dinv1_ref[0],
                  watt2_ref[0], wagg2_ref[0], bagg2_ref[0])
    # fc_output fused into the epilogue (lane-dense padded output)
    o_ref[0] = jnp.dot(h, wo_ref[0],
                       preferred_element_type=jnp.float32) + bo_ref[0]


# ----------------------------------------------------------------------------
# pallas_call wrapper
# ----------------------------------------------------------------------------
def pallas_decgat(feats_p, wi, bi, masks0, dinv0, watt1, wagg1, bagg1,
                  masks1, dinv1, watt2, wagg2, bagg2, wo, bo):
    ns0p, fdim = feats_p.shape
    nd0p = masks0.shape[1]
    nd1p = masks1.shape[1]

    args = (feats_p, wi, bi,
            masks0, masks0, dinv0, watt1, wagg1, bagg1,
            masks1, masks1, dinv1, watt2, wagg2, bagg2, wo, bo)
    in_specs = [
        _shared_spec(feats_p.shape),
        _mode_spec(wi.shape), _mode_spec(bi.shape),
        _mode_spec(masks0.shape), _mode_spec(masks0.shape, swap=True),
        _mode_spec(dinv0.shape),
        _mode_spec(watt1.shape), _mode_spec(wagg1.shape), _mode_spec(bagg1.shape),
        _mode_spec(masks1.shape), _mode_spec(masks1.shape, swap=True),
        _mode_spec(dinv1.shape),
        _mode_spec(watt2.shape), _mode_spec(wagg2.shape), _mode_spec(bagg2.shape),
        _mode_spec(wo.shape), _mode_spec(bo.shape),
    ]
    out_shape = jax.ShapeDtypeStruct((2, nd1p, OUT_PAD), jnp.float32)

    # advisory scheduling hint for XLA around the custom call
    flops = 2 * 2 * (ns0p * fdim * DP + ns0p * DP * ATT_PAD
                     + 3 * nd0p * ns0p * DP + nd0p * DP * DP
                     + nd0p * DP * ATT_PAD + 3 * nd1p * nd0p * DP
                     + nd1p * DP * DP + nd1p * DP * OUT_PAD)
    transcendentals = 2 * (2 * nd0p * ns0p + 2 * nd1p * nd0p + nd0p + nd1p)
    bytes_accessed = (sum(int(a.size) * int(a.dtype.itemsize) for a in args)
                      + 2 * nd1p * OUT_PAD * 4)

    return pl.pallas_call(
        _decgat_kernel,
        grid=(2,),
        in_specs=in_specs,
        out_specs=_mode_spec(out_shape.shape),
        out_shape=out_shape,
        compiler_params=pltpu.CompilerParams(
            dimension_semantics=("parallel",),
            vmem_limit_bytes=_vmem_limit_bytes()),
        cost_estimate=pl.CostEstimate(
            flops=flops, transcendentals=transcendentals,
            bytes_accessed=bytes_accessed),
    )(*args)


# ----------------------------------------------------------------------------
# host-side parameter / graph packing (one-time: transpose, fuse, pad, stack)
# ----------------------------------------------------------------------------
def _stack_modes(fn):
    return jnp.stack([fn(m) for m in ETYPES], axis=0)


def _pack_block(block, nd_p, ns_p):
    """Stack both etype adjacency masks once (bf16, values exactly 0/1) and
    precompute 1/in-degree per etype. The 'other' mask of grid step m is row
    (1-m) of the same stacked array, selected via the BlockSpec index_map."""
    masks_f32 = jnp.stack(
        [_pad_to(block["m_" + m], (nd_p, ns_p)) for m in ETYPES], axis=0)
    deg = jnp.sum(masks_f32, axis=2, keepdims=True)
    inv_deg = jnp.where(deg > 0.0, 1.0 / deg, 0.0)      # precomputed 1/deg
    return masks_f32.astype(jnp.bfloat16), inv_deg


def _pack_dec_params(layer_params):
    """Fold the 2-class logit differences host-side (5 real attention columns)
    and keep the pre-transposed One_Neighbor weight separate so it is applied
    on the dst side of the aggregation."""
    def watt(mode):
        p = layer_params[mode]
        d = p["w_agg"].shape[0]
        w = jnp.zeros((DP, ATT_PAD), jnp.float32)
        w = w.at[:d, 0].set(p["wn"][0] - p["wn"][1])            # node attn diff
        w = w.at[:d, 1].set(p["we"][0, :d] - p["we"][1, :d])    # e-edge src diff
        w = w.at[:d, 2].set(p["we"][0, d:] - p["we"][1, d:])    # e-edge dst diff
        w = w.at[:d, 3].set(p["wi"][0, :d])                     # i-edge src
        w = w.at[:d, 4].set(p["wi"][0, d:])                     # i-edge dst
        return w

    def wagg(mode):
        p = layer_params[mode]
        d = p["w_agg"].shape[0]
        w = jnp.zeros((DP, DP), jnp.float32)
        return w.at[:d, :d].set(p["w_agg"].T)

    def bagg(mode):
        return _pad_to(layer_params[mode]["b_agg"].reshape(1, -1), (1, DP))

    return _stack_modes(watt), _stack_modes(wagg), _stack_modes(bagg)


def _pack_fc_input(params, fdim):
    def wi(mode):
        return _pad_to(params["fc_input"][mode]["w"].T, (fdim, DP))

    def bi(mode):
        return _pad_to(params["fc_input"][mode]["b"].reshape(1, -1), (1, DP))

    return _stack_modes(wi), _stack_modes(bi)


def _pack_fc_output(params):
    def wo(mode):
        return _pad_to(params["fc_output"][mode]["w"].T, (DP, OUT_PAD))

    def bo(mode):
        return _pad_to(params["fc_output"][mode]["b"].reshape(1, -1), (1, OUT_PAD))

    return _stack_modes(wo), _stack_modes(bo)


# ----------------------------------------------------------------------------
# DecGAT forward (Pallas path)
# ----------------------------------------------------------------------------
def decgat_forward(feats, blocks, params):
    fdim = feats.shape[1]
    d = params["fc_input"][ETYPES[0]]["w"].shape[0]
    odim = params["fc_output"][ETYPES[0]]["w"].shape[0]
    assert d <= DP and odim <= OUT_PAD and N_ATT <= ATT_PAD

    n_src0 = feats.shape[0]
    n_dst0 = blocks[0]["n_dst"]
    n_dst1 = blocks[1]["n_dst"]
    assert n_dst1 <= n_dst0 <= n_src0
    ns0p, nd0p, nd1p = _round8(n_src0), _round8(n_dst0), _round8(n_dst1)

    feats_p = _pad_to(feats, (ns0p, fdim))

    # layer-1 operands (block 0)
    masks0, dinv0 = _pack_block(blocks[0], nd0p, ns0p)
    wi, bi = _pack_fc_input(params, fdim)
    watt1, wagg1, bagg1 = _pack_dec_params(params["layer1"])

    # layer-2 operands (block 1)
    masks1, dinv1 = _pack_block(blocks[1], nd1p, nd0p)
    watt2, wagg2, bagg2 = _pack_dec_params(params["layer2"])
    wo, bo = _pack_fc_output(params)

    outp = pallas_decgat(feats_p, wi, bi, masks0, dinv0, watt1, wagg1, bagg1,
                         masks1, dinv1, watt2, wagg2, bagg2, wo, bo)
    return {mode: outp[i, :n_dst1, :odim] for i, mode in enumerate(ETYPES)}


# ----------------------------------------------------------------------------
# Pure-JAX reference (mirrors the PyTorch module, for correctness check)
# ----------------------------------------------------------------------------
def _ref_dec_block(z, m_mode, m_other, n_dst, p):
    n_src, d = z.shape
    z_dst = z[:n_dst]
    n_alpha = jax.nn.softmax(z_dst @ p["wn"].T, axis=1)
    pair = jnp.concatenate(
        [jnp.broadcast_to(z[None, :, :], (n_dst, n_src, d)),
         jnp.broadcast_to(z_dst[:, None, :], (n_dst, n_src, d))], axis=-1)
    e_soft = jax.nn.softmax(pair @ p["we"].T, axis=-1)       # (Nd, Ns, 2)
    e0, e1 = e_soft[..., 0], e_soft[..., 1]
    sig = jax.nn.sigmoid((pair @ p["wi"].T)[..., 0])         # (Nd, Ns)

    wz = z @ p["w_agg"].T + p["b_agg"]
    deg = m_mode.sum(axis=1, keepdims=True)
    inv_deg = jnp.where(deg > 0, 1.0 / deg, 0.0)
    f = jax.nn.relu(((m_mode * e0) @ wz) * inv_deg)
    one_hop = f + n_alpha[:, 0:1] * z_dst
    e_h = (m_mode * e1) @ z
    i_h = (m_other * sig) @ z
    # 0.5*((e_h+i_h)^2 - e_h^2 - i_h^2) == e_h * i_h
    nia = jax.nn.relu(e_h * i_h) + n_alpha[:, 1:2] * z_dst
    return 0.5 * (one_hop + nia)


def decgat_forward_ref(feats, blocks, params):
    emb = {}
    for mode in ETYPES:
        fc = params["fc_input"][mode]
        emb[mode] = feats @ fc["w"].T + fc["b"]
    for mode in ETYPES:
        other = ETYPES[1] if mode == ETYPES[0] else ETYPES[0]
        emb[mode] = _ref_dec_block(
            emb[mode], blocks[0]["m_" + mode], blocks[0]["m_" + other],
            blocks[0]["n_dst"], params["layer1"][mode])
    out = {}
    for mode in ETYPES:
        other = ETYPES[1] if mode == ETYPES[0] else ETYPES[0]
        h = _ref_dec_block(
            emb[mode], blocks[1]["m_" + mode], blocks[1]["m_" + other],
            blocks[1]["n_dst"], params["layer2"][mode])
        fc = params["fc_output"][mode]
        out[mode] = h @ fc["w"].T + fc["b"]
    return out


# ----------------------------------------------------------------------------
# Deterministic parameter / graph construction
# ----------------------------------------------------------------------------
def init_params(key, feature_dim, input_dim, output_dim):
    gain = jnp.sqrt(2.0)  # nn.init.calculate_gain('relu')
    keys = iter(jax.random.split(key, 64))

    def xavier(shape):
        fan_out, fan_in = shape
        std = gain * jnp.sqrt(2.0 / (fan_in + fan_out))
        return std * jax.random.normal(next(keys), shape, jnp.float32)

    def dense(shape):
        return 0.1 * jax.random.normal(next(keys), shape, jnp.float32)

    params = {"fc_input": {}, "fc_output": {}, "layer1": {}, "layer2": {}}
    for mode in ETYPES:
        params["fc_input"][mode] = {"w": dense((input_dim, feature_dim)),
                                    "b": dense((input_dim,))}
        params["fc_output"][mode] = {"w": dense((output_dim, input_dim)),
                                     "b": dense((output_dim,))}
        for lyr in ("layer1", "layer2"):
            params[lyr][mode] = {
                "wn": xavier((2, input_dim)),              # node_attention
                "we": xavier((2, 2 * input_dim)),          # e_edge_attention
                "wi": xavier((1, 2 * input_dim)),          # i_edge_attention
                "w_agg": xavier((input_dim, input_dim)),   # One_Neighbor Weight
                "b_agg": dense((input_dim,)),              # One_Neighbor bias
            }
    return params


def make_block(key, n_src, n_dst, p_edge=0.4):
    k1, k2 = jax.random.split(key)
    eye = jnp.eye(n_dst, n_src, dtype=jnp.float32)  # every dst has >=1 in-edge
    m_cor = jnp.maximum(
        jax.random.bernoulli(k1, p_edge, (n_dst, n_src)).astype(jnp.float32), eye)
    m_sim = jnp.maximum(
        jax.random.bernoulli(k2, p_edge, (n_dst, n_src)).astype(jnp.float32), eye)
    return {"m_cor": m_cor, "m_sim": m_sim, "n_dst": n_dst}


# ----------------------------------------------------------------------------
if __name__ == "__main__":
    key = jax.random.PRNGKey(0)
    k_feat, k_b0, k_b1, k_param = jax.random.split(key, 4)

    feature_dim, input_dim, output_dim = 16, 32, 8
    n_src0, n_dst0, n_dst1 = 24, 16, 8   # block1's src nodes == block0's dst nodes

    feats = jax.random.normal(k_feat, (n_src0, feature_dim), jnp.float32)
    blocks = [make_block(k_b0, n_src0, n_dst0),
              make_block(k_b1, n_dst0, n_dst1)]
    params = init_params(k_param, feature_dim, input_dim, output_dim)

    out = decgat_forward(feats, blocks, params)
    out = {m: jax.block_until_ready(v) for m, v in out.items()}

    # full-precision reference (kernel/ref op order differs after the matmul
    # restructure, so pin the reference's matmul precision to float32)
    with jax.default_matmul_precision("float32"):
        ref = decgat_forward_ref(feats, blocks, params)
        ref = {m: jax.block_until_ready(v) for m, v in ref.items()}

    for mode in ETYPES:
        assert out[mode].shape == (n_dst1, output_dim)
        assert jnp.allclose(out[mode], ref[mode], atol=1e-4, rtol=1e-4), mode

    print("KERNEL_OK")
</pallas_src>

<mosaic_0001>
module attributes {stable_mosaic.version = 11 : i64} {
  func.func @_decgat_kernel(%arg0: i32, %arg1: memref<24x16xf32, #tpu.memory_space<vmem>>, %arg2: memref<1x16x128xf32, #tpu.memory_space<vmem>>, %arg3: memref<1x1x128xf32, #tpu.memory_space<vmem>>, %arg4: memref<1x16x24xbf16, #tpu.memory_space<vmem>>, %arg5: memref<1x16x24xbf16, #tpu.memory_space<vmem>>, %arg6: memref<1x16x1xf32, #tpu.memory_space<vmem>>, %arg7: memref<1x128x128xf32, #tpu.memory_space<vmem>>, %arg8: memref<1x128x128xf32, #tpu.memory_space<vmem>>, %arg9: memref<1x1x128xf32, #tpu.memory_space<vmem>>, %arg10: memref<1x8x16xbf16, #tpu.memory_space<vmem>>, %arg11: memref<1x8x16xbf16, #tpu.memory_space<vmem>>, %arg12: memref<1x8x1xf32, #tpu.memory_space<vmem>>, %arg13: memref<1x128x128xf32, #tpu.memory_space<vmem>>, %arg14: memref<1x128x128xf32, #tpu.memory_space<vmem>>, %arg15: memref<1x1x128xf32, #tpu.memory_space<vmem>>, %arg16: memref<1x128x128xf32, #tpu.memory_space<vmem>>, %arg17: memref<1x1x128xf32, #tpu.memory_space<vmem>>, %arg18: memref<1x8x128xf32, #tpu.memory_space<vmem>>) attributes {dimension_semantics = [#tpu.dimension_semantics<parallel>], iteration_bounds = array<i64: 2>, scalar_prefetch = 0 : i64, scratch_operands = 0 : i64, tpu.core_type = #tpu.core_type<tc>, window_params = [{pipeline_mode = #tpu.pipeline_mode<synchronous>, transform_indices = @transform_0, window_bounds = array<i64: 24, 16>}, {transform_indices = @transform_1, window_bounds = array<i64: 1, 16, 128>}, {transform_indices = @transform_2, window_bounds = array<i64: 1, 1, 128>}, {transform_indices = @transform_3, window_bounds = array<i64: 1, 16, 24>}, {transform_indices = @transform_4, window_bounds = array<i64: 1, 16, 24>}, {transform_indices = @transform_5, window_bounds = array<i64: 1, 16, 1>}, {transform_indices = @transform_6, window_bounds = array<i64: 1, 128, 128>}, {transform_indices = @transform_7, window_bounds = array<i64: 1, 128, 128>}, {transform_indices = @transform_8, window_bounds = array<i64: 1, 1, 128>}, {transform_indices = @transform_9, window_bounds = array<i64: 1, 8, 16>}, {transform_indices = @transform_10, window_bounds = array<i64: 1, 8, 16>}, {transform_indices = @transform_11, window_bounds = array<i64: 1, 8, 1>}, {transform_indices = @transform_12, window_bounds = array<i64: 1, 128, 128>}, {transform_indices = @transform_13, window_bounds = array<i64: 1, 128, 128>}, {transform_indices = @transform_14, window_bounds = array<i64: 1, 1, 128>}, {transform_indices = @transform_15, window_bounds = array<i64: 1, 128, 128>}, {transform_indices = @transform_16, window_bounds = array<i64: 1, 1, 128>}, {transform_indices = @transform_17, window_bounds = array<i64: 1, 8, 128>}]} {
    %c0 = arith.constant 0 : index
    %c0_0 = arith.constant 0 : index
    %0 = vector.load %arg1[%c0, %c0_0] : memref<24x16xf32, #tpu.memory_space<vmem>>, vector<24x16xf32>
    %c0_1 = arith.constant 0 : index
    %c0_2 = arith.constant 0 : index
    %c0_3 = arith.constant 0 : index
    %1 = vector.load %arg2[%c0_1, %c0_2, %c0_3] : memref<1x16x128xf32, #tpu.memory_space<vmem>>, vector<1x16x128xf32>
    %2 = vector.shape_cast %1 : vector<1x16x128xf32> to vector<16x128xf32>
    %cst = arith.constant dense<0.000000e+00> : vector<24x128xf32>
    %3 = tpu.matmul %0, %2, %cst {dimension_numbers = #tpu.dot_dimension_numbers<[1], [0], [0], [1], [0, 0, 1, 1], [], []>} : vector<24x16xf32>, vector<16x128xf32>, vector<24x128xf32> -> vector<24x128xf32>
    %c0_4 = arith.constant 0 : index
    %c0_5 = arith.constant 0 : index
    %c0_6 = arith.constant 0 : index
    %4 = vector.load %arg3[%c0_4, %c0_5, %c0_6] : memref<1x1x128xf32, #tpu.memory_space<vmem>>, vector<1x1x128xf32>
    %5 = vector.shape_cast %4 : vector<1x1x128xf32> to vector<1x128xf32>
    %6 = vector.broadcast %5 : vector<1x128xf32> to vector<24x128xf32>
    %7 = arith.addf %3, %6 : vector<24x128xf32>
    %c0_7 = arith.constant 0 : index
    %c0_8 = arith.constant 0 : index
    %c0_9 = arith.constant 0 : index
    %8 = vector.load %arg4[%c0_7, %c0_8, %c0_9] : memref<1x16x24xbf16, #tpu.memory_space<vmem>>, vector<1x16x24xbf16>
    %9 = vector.shape_cast %8 : vector<1x16x24xbf16> to vector<16x24xbf16>
    %c0_10 = arith.constant 0 : index
    %c0_11 = arith.constant 0 : index
    %c0_12 = arith.constant 0 : index
    %10 = vector.load %arg5[%c0_10, %c0_11, %c0_12] : memref<1x16x24xbf16, #tpu.memory_space<vmem>>, vector<1x16x24xbf16>
    %11 = vector.shape_cast %10 : vector<1x16x24xbf16> to vector<16x24xbf16>
    %c0_13 = arith.constant 0 : index
    %c0_14 = arith.constant 0 : index
    %c0_15 = arith.constant 0 : index
    %12 = vector.load %arg6[%c0_13, %c0_14, %c0_15] : memref<1x16x1xf32, #tpu.memory_space<vmem>>, vector<1x16x1xf32>
    %13 = vector.shape_cast %12 : vector<1x16x1xf32> to vector<16x1xf32>
    %c0_16 = arith.constant 0 : index
    %c0_17 = arith.constant 0 : index
    %c0_18 = arith.constant 0 : index
    %14 = vector.load %arg7[%c0_16, %c0_17, %c0_18] : memref<1x128x128xf32, #tpu.memory_space<vmem>>, vector<1x128x128xf32>
    %15 = vector.shape_cast %14 : vector<1x128x128xf32> to vector<128x128xf32>
    %c0_19 = arith.constant 0 : index
    %c0_20 = arith.constant 0 : index
    %c0_21 = arith.constant 0 : index
    %16 = vector.load %arg8[%c0_19, %c0_20, %c0_21] : memref<1x128x128xf32, #tpu.memory_space<vmem>>, vector<1x128x128xf32>
    %17 = vector.shape_cast %16 : vector<1x128x128xf32> to vector<128x128xf32>
    %c0_22 = arith.constant 0 : index
    %c0_23 = arith.constant 0 : index
    %c0_24 = arith.constant 0 : index
    %18 = vector.load %arg9[%c0_22, %c0_23, %c0_24] : memref<1x1x128xf32, #tpu.memory_space<vmem>>, vector<1x1x128xf32>
    %19 = vector.shape_cast %18 : vector<1x1x128xf32> to vector<1x128xf32>
    %20 = vector.extract_strided_slice %7 {offsets = [0, 0], sizes = [16, 128], strides = [1, 1]} : vector<24x128xf32> to vector<16x128xf32>
    %cst_25 = arith.constant dense<0.000000e+00> : vector<24x128xf32>
    %21 = tpu.matmul %7, %15, %cst_25 {dimension_numbers = #tpu.dot_dimension_numbers<[1], [0], [0], [1], [0, 0, 1, 1], [], []>} : vector<24x128xf32>, vector<128x128xf32>, vector<24x128xf32> -> vector<24x128xf32>
    %22 = vector.extract_strided_slice %21 {offsets = [0, 0], sizes = [16, 128], strides = [1, 1]} : vector<24x128xf32> to vector<16x128xf32>
    %23 = vector.extract_strided_slice %22 {offsets = [0, 0], sizes = [16, 1], strides = [1, 1]} : vector<16x128xf32> to vector<16x1xf32>
    %24 = arith.negf %23 : vector<16x1xf32>
    %25 = math.exp %24 : vector<16x1xf32>
    %cst_26 = arith.constant 1.000000e+00 : f32
    %26 = vector.broadcast %cst_26 : f32 to vector<16x1xf32>
    %27 = arith.addf %26, %25 : vector<16x1xf32>
    %28 = arith.divf %26, %27 : vector<16x1xf32>
    %cst_27 = arith.constant 1.000000e+00 : f32
    %29 = vector.broadcast %cst_27 : f32 to vector<16x1xf32>
    %30 = arith.subf %29, %28 : vector<16x1xf32>
    %31 = arith.extf %9 : vector<16x24xbf16> to vector<16x24xf32>
    %32 = arith.extf %11 : vector<16x24xbf16> to vector<16x24xf32>
    %33 = vector.extract_strided_slice %21 {offsets = [0, 1], sizes = [24, 1], strides = [1, 1]} : vector<24x128xf32> to vector<24x1xf32>
    %34 = tpu.transpose %33, [1, 0] : vector<24x1xf32> -> vector<1x24xf32>
    %35 = vector.extract_strided_slice %22 {offsets = [0, 2], sizes = [16, 1], strides = [1, 1]} : vector<16x128xf32> to vector<16x1xf32>
    %36 = vector.broadcast %35 : vector<16x1xf32> to vector<16x24xf32>
    %37 = vector.broadcast %34 : vector<1x24xf32> to vector<16x24xf32>
    %38 = arith.addf %36, %37 : vector<16x24xf32>
    %39 = arith.negf %38 : vector<16x24xf32>
    %40 = math.exp %39 : vector<16x24xf32>
    %cst_28 = arith.constant 1.000000e+00 : f32
    %41 = vector.broadcast %cst_28 : f32 to vector<16x24xf32>
    %42 = arith.addf %41, %40 : vector<16x24xf32>
    %43 = arith.divf %41, %42 : vector<16x24xf32>
    %44 = arith.mulf %31, %43 : vector<16x24xf32>
    %45 = arith.subf %31, %44 : vector<16x24xf32>
    %46 = vector.extract_strided_slice %22 {offsets = [0, 4], sizes = [16, 1], strides = [1, 1]} : vector<16x128xf32> to vector<16x1xf32>
    %47 = vector.extract_strided_slice %21 {offsets = [0, 3], sizes = [24, 1], strides = [1, 1]} : vector<24x128xf32> to vector<24x1xf32>
    %48 = tpu.transpose %47, [1, 0] : vector<24x1xf32> -> vector<1x24xf32>
    %49 = vector.broadcast %46 : vector<16x1xf32> to vector<16x24xf32>
    %50 = vector.broadcast %48 : vector<1x24xf32> to vector<16x24xf32>
    %51 = arith.addf %49, %50 : vector<16x24xf32>
    %52 = arith.negf %51 : vector<16x24xf32>
    %53 = math.exp %52 : vector<16x24xf32>
    %cst_29 = arith.constant 1.000000e+00 : f32
    %54 = vector.broadcast %cst_29 : f32 to vector<16x24xf32>
    %55 = arith.addf %54, %53 : vector<16x24xf32>
    %56 = arith.divf %54, %55 : vector<16x24xf32>
    %57 = arith.mulf %32, %56 : vector<16x24xf32>
    %58 = tpu.concatenate %44, %45, %57 in 0 : vector<16x24xf32>, vector<16x24xf32>, vector<16x24xf32> -> vector<48x24xf32>
    %cst_30 = arith.constant dense<0.000000e+00> : vector<48x128xf32>
    %59 = tpu.matmul %58, %7, %cst_30 {dimension_numbers = #tpu.dot_dimension_numbers<[1], [0], [0], [1], [0, 0, 1, 1], [], []>} : vector<48x24xf32>, vector<24x128xf32>, vector<48x128xf32> -> vector<48x128xf32>
    %60 = vector.extract_strided_slice %59 {offsets = [0, 0], sizes = [16, 128], strides = [1, 1]} : vector<48x128xf32> to vector<16x128xf32>
    %61 = vector.extract_strided_slice %59 {offsets = [16, 0], sizes = [16, 128], strides = [1, 1]} : vector<48x128xf32> to vector<16x128xf32>
    %62 = vector.extract_strided_slice %59 {offsets = [32, 0], sizes = [16, 128], strides = [1, 1]} : vector<48x128xf32> to vector<16x128xf32>
    %cst_31 = arith.constant dense<0.000000e+00> : vector<16x128xf32>
    %63 = tpu.matmul %60, %17, %cst_31 {dimension_numbers = #tpu.dot_dimension_numbers<[1], [0], [0], [1], [0, 0, 1, 1], [], []>} : vector<16x128xf32>, vector<128x128xf32>, vector<16x128xf32> -> vector<16x128xf32>
    %cst_32 = arith.constant dense<0.000000e+00> : vector<16xf32>
    %64 = vector.multi_reduction <add>, %44, %cst_32 [1] : vector<16x24xf32> to vector<16xf32>
    %65 = vector.shape_cast %64 : vector<16xf32> to vector<16x1xf32>
    %66 = vector.broadcast %65 : vector<16x1xf32> to vector<16x128xf32>
    %67 = vector.broadcast %19 : vector<1x128xf32> to vector<16x128xf32>
    %68 = arith.mulf %66, %67 : vector<16x128xf32>
    %69 = arith.addf %63, %68 : vector<16x128xf32>
    %70 = vector.broadcast %13 : vector<16x1xf32> to vector<16x128xf32>
    %71 = arith.mulf %69, %70 : vector<16x128xf32>
    %cst_33 = arith.constant 0.000000e+00 : f32
    %72 = vector.broadcast %cst_33 : f32 to vector<16x128xf32>
    %73 = arith.maximumf %71, %72 : vector<16x128xf32>
    %74 = vector.broadcast %28 : vector<16x1xf32> to vector<16x128xf32>
    %75 = arith.mulf %74, %20 : vector<16x128xf32>
    %76 = arith.addf %73, %75 : vector<16x128xf32>
    %77 = arith.mulf %61, %62 : vector<16x128xf32>
    %cst_34 = arith.constant 0.000000e+00 : f32
    %78 = vector.broadcast %cst_34 : f32 to vector<16x128xf32>
    %79 = arith.maximumf %77, %78 : vector<16x128xf32>
    %80 = vector.broadcast %30 : vector<16x1xf32> to vector<16x128xf32>
    %81 = arith.mulf %80, %20 : vector<16x128xf32>
    %82 = arith.addf %79, %81 : vector<16x128xf32>
    %83 = arith.addf %76, %82 : vector<16x128xf32>
    %cst_35 = arith.constant 5.000000e-01 : f32
    %84 = vector.broadcast %cst_35 : f32 to vector<16x128xf32>
    %85 = arith.mulf %84, %83 : vector<16x128xf32>
    %c0_36 = arith.constant 0 : index
    %c0_37 = arith.constant 0 : index
    %c0_38 = arith.constant 0 : index
    %86 = vector.load %arg10[%c0_36, %c0_37, %c0_38] : memref<1x8x16xbf16, #tpu.memory_space<vmem>>, vector<1x8x16xbf16>
    %87 = vector.shape_cast %86 : vector<1x8x16xbf16> to vector<8x16xbf16>
    %c0_39 = arith.constant 0 : index
    %c0_40 = arith.constant 0 : index
    %c0_41 = arith.constant 0 : index
    %88 = vector.load %arg11[%c0_39, %c0_40, %c0_41] : memref<1x8x16xbf16, #tpu.memory_space<vmem>>, vector<1x8x16xbf16>
    %89 = vector.shape_cast %88 : vector<1x8x16xbf16> to vector<8x16xbf16>
    %c0_42 = arith.constant 0 : index
    %c0_43 = arith.constant 0 : index
    %c0_44 = arith.constant 0 : index
    %90 = vector.load %arg12[%c0_42, %c0_43, %c0_44] : memref<1x8x1xf32, #tpu.memory_space<vmem>>, vector<1x8x1xf32>
    %91 = vector.shape_cast %90 : vector<1x8x1xf32> to vector<8x1xf32>
    %c0_45 = arith.constant 0 : index
    %c0_46 = arith.constant 0 : index
    %c0_47 = arith.constant 0 : index
    %92 = vector.load %arg13[%c0_45, %c0_46, %c0_47] : memref<1x128x128xf32, #tpu.memory_space<vmem>>, vector<1x128x128xf32>
    %93 = vector.shape_cast %92 : vector<1x128x128xf32> to vector<128x128xf32>
    %c0_48 = arith.constant 0 : index
    %c0_49 = arith.constant 0 : index
    %c0_50 = arith.constant 0 : index
    %94 = vector.load %arg14[%c0_48, %c0_49, %c0_50] : memref<1x128x128xf32, #tpu.memory_space<vmem>>, vector<1x128x128xf32>
    %95 = vector.shape_cast %94 : vector<1x128x128xf32> to vector<128x128xf32>
    %c0_51 = arith.constant 0 : index
    %c0_52 = arith.constant 0 : index
    %c0_53 = arith.constant 0 : index
    %96 = vector.load %arg15[%c0_51, %c0_52, %c0_53] : memref<1x1x128xf32, #tpu.memory_space<vmem>>, vector<1x1x128xf32>
    %97 = vector.shape_cast %96 : vector<1x1x128xf32> to vector<1x128xf32>
    %98 = vector.extract_strided_slice %85 {offsets = [0, 0], sizes = [8, 128], strides = [1, 1]} : vector<16x128xf32> to vector<8x128xf32>
    %cst_54 = arith.constant dense<0.000000e+00> : vector<16x128xf32>
    %99 = tpu.matmul %85, %93, %cst_54 {dimension_numbers = #tpu.dot_dimension_numbers<[1], [0], [0], [1], [0, 0, 1, 1], [], []>} : vector<16x128xf32>, vector<128x128xf32>, vector<16x128xf32> -> vector<16x128xf32>
    %100 = vector.extract_strided_slice %99 {offsets = [0, 0], sizes = [8, 128], strides = [1, 1]} : vector<16x128xf32> to vector<8x128xf32>
    %101 = vector.extract_strided_slice %100 {offsets = [0, 0], sizes = [8, 1], strides = [1, 1]} : vector<8x128xf32> to vector<8x1xf32>
    %102 = arith.negf %101 : vector<8x1xf32>
    %103 = math.exp %102 : vector<8x1xf32>
    %cst_55 = arith.constant 1.000000e+00 : f32
    %104 = vector.broadcast %cst_55 : f32 to vector<8x1xf32>
    %105 = arith.addf %104, %103 : vector<8x1xf32>
    %106 = arith.divf %104, %105 : vector<8x1xf32>
    %cst_56 = arith.constant 1.000000e+00 : f32
    %107 = vector.broadcast %cst_56 : f32 to vector<8x1xf32>
    %108 = arith.subf %107, %106 : vector<8x1xf32>
    %109 = arith.extf %87 : vector<8x16xbf16> to vector<8x16xf32>
    %110 = arith.extf %89 : vector<8x16xbf16> to vector<8x16xf32>
    %111 = vector.extract_strided_slice %99 {offsets = [0, 1], sizes = [16, 1], strides = [1, 1]} : vector<16x128xf32> to vector<16x1xf32>
    %112 = tpu.transpose %111, [1, 0] : vector<16x1xf32> -> vector<1x16xf32>
    %113 = vector.extract_strided_slice %100 {offsets = [0, 2], sizes = [8, 1], strides = [1, 1]} : vector<8x128xf32> to vector<8x1xf32>
    %114 = vector.broadcast %113 : vector<8x1xf32> to vector<8x16xf32>
    %115 = vector.broadcast %112 : vector<1x16xf32> to vector<8x16xf32>
    %116 = arith.addf %114, %115 : vector<8x16xf32>
    %117 = arith.negf %116 : vector<8x16xf32>
    %118 = math.exp %117 : vector<8x16xf32>
    %cst_57 = arith.constant 1.000000e+00 : f32
    %119 = vector.broadcast %cst_57 : f32 to vector<8x16xf32>
    %120 = arith.addf %119, %118 : vector<8x16xf32>
    %121 = arith.divf %119, %120 : vector<8x16xf32>
    %122 = arith.mulf %109, %121 : vector<8x16xf32>
    %123 = arith.subf %109, %122 : vector<8x16xf32>
    %124 = vector.extract_strided_slice %100 {offsets = [0, 4], sizes = [8, 1], strides = [1, 1]} : vector<8x128xf32> to vector<8x1xf32>
    %125 = vector.extract_strided_slice %99 {offsets = [0, 3], sizes = [16, 1], strides = [1, 1]} : vector<16x128xf32> to vector<16x1xf32>
    %126 = tpu.transpose %125, [1, 0] : vector<16x1xf32> -> vector<1x16xf32>
    %127 = vector.broadcast %124 : vector<8x1xf32> to vector<8x16xf32>
    %128 = vector.broadcast %126 : vector<1x16xf32> to vector<8x16xf32>
    %129 = arith.addf %127, %128 : vector<8x16xf32>
    %130 = arith.negf %129 : vector<8x16xf32>
    %131 = math.exp %130 : vector<8x16xf32>
    %cst_58 = arith.constant 1.000000e+00 : f32
    %132 = vector.broadcast %cst_58 : f32 to vector<8x16xf32>
    %133 = arith.addf %132, %131 : vector<8x16xf32>
    %134 = arith.divf %132, %133 : vector<8x16xf32>
    %135 = arith.mulf %110, %134 : vector<8x16xf32>
    %136 = tpu.concatenate %122, %123, %135 in 0 : vector<8x16xf32>, vector<8x16xf32>, vector<8x16xf32> -> vector<24x16xf32>
    %cst_59 = arith.constant dense<0.000000e+00> : vector<24x128xf32>
    %137 = tpu.matmul %136, %85, %cst_59 {dimension_numbers = #tpu.dot_dimension_numbers<[1], [0], [0], [1], [0, 0, 1, 1], [], []>} : vector<24x16xf32>, vector<16x128xf32>, vector<24x128xf32> -> vector<24x128xf32>
    %138 = vector.extract_strided_slice %137 {offsets = [0, 0], sizes = [8, 128], strides = [1, 1]} : vector<24x128xf32> to vector<8x128xf32>
    %139 = vector.extract_strided_slice %137 {offsets = [8, 0], sizes = [8, 128], strides = [1, 1]} : vector<24x128xf32> to vector<8x128xf32>
    %140 = vector.extract_strided_slice %137 {offsets = [16, 0], sizes = [8, 128], strides = [1, 1]} : vector<24x128xf32> to vector<8x128xf32>
    %cst_60 = arith.constant dense<0.000000e+00> : vector<8x128xf32>
    %141 = tpu.matmul %138, %95, %cst_60 {dimension_numbers = #tpu.dot_dimension_numbers<[1], [0], [0], [1], [0, 0, 1, 1], [], []>} : vector<8x128xf32>, vector<128x128xf32>, vector<8x128xf32> -> vector<8x128xf32>
    %cst_61 = arith.constant dense<0.000000e+00> : vector<8xf32>
    %142 = vector.multi_reduction <add>, %122, %cst_61 [1] : vector<8x16xf32> to vector<8xf32>
    %143 = vector.shape_cast %142 : vector<8xf32> to vector<8x1xf32>
    %144 = vector.broadcast %143 : vector<8x1xf32> to vector<8x128xf32>
    %145 = vector.broadcast %97 : vector<1x128xf32> to vector<8x128xf32>
    %146 = arith.mulf %144, %145 : vector<8x128xf32>
    %147 = arith.addf %141, %146 : vector<8x128xf32>
    %148 = vector.broadcast %91 : vector<8x1xf32> to vector<8x128xf32>
    %149 = arith.mulf %147, %148 : vector<8x128xf32>
    %cst_62 = arith.constant 0.000000e+00 : f32
    %150 = vector.broadcast %cst_62 : f32 to vector<8x128xf32>
    %151 = arith.maximumf %149, %150 : vector<8x128xf32>
    %152 = vector.broadcast %106 : vector<8x1xf32> to vector<8x128xf32>
    %153 = arith.mulf %152, %98 : vector<8x128xf32>
    %154 = arith.addf %151, %153 : vector<8x128xf32>
    %155 = arith.mulf %139, %140 : vector<8x128xf32>
    %cst_63 = arith.constant 0.000000e+00 : f32
    %156 = vector.broadcast %cst_63 : f32 to vector<8x128xf32>
    %157 = arith.maximumf %155, %156 : vector<8x128xf32>
    %158 = vector.broadcast %108 : vector<8x1xf32> to vector<8x128xf32>
    %159 = arith.mulf %158, %98 : vector<8x128xf32>
    %160 = arith.addf %157, %159 : vector<8x128xf32>
    %161 = arith.addf %154, %160 : vector<8x128xf32>
    %cst_64 = arith.constant 5.000000e-01 : f32
    %162 = vector.broadcast %cst_64 : f32 to vector<8x128xf32>
    %163 = arith.mulf %162, %161 : vector<8x128xf32>
    %c0_65 = arith.constant 0 : index
    %c0_66 = arith.constant 0 : index
    %c0_67 = arith.constant 0 : index
    %164 = vector.load %arg16[%c0_65, %c0_66, %c0_67] : memref<1x128x128xf32, #tpu.memory_space<vmem>>, vector<1x128x128xf32>
    %165 = vector.shape_cast %164 : vector<1x128x128xf32> to vector<128x128xf32>
    %cst_68 = arith.constant dense<0.000000e+00> : vector<8x128xf32>
    %166 = tpu.matmul %163, %165, %cst_68 {dimension_numbers = #tpu.dot_dimension_numbers<[1], [0], [0], [1], [0, 0, 1, 1], [], []>} : vector<8x128xf32>, vector<128x128xf32>, vector<8x128xf32> -> vector<8x128xf32>
    %c0_69 = arith.constant 0 : index
    %c0_70 = arith.constant 0 : index
    %c0_71 = arith.constant 0 : index
    %167 = vector.load %arg17[%c0_69, %c0_70, %c0_71] : memref<1x1x128xf32, #tpu.memory_space<vmem>>, vector<1x1x128xf32>
    %168 = vector.shape_cast %167 : vector<1x1x128xf32> to vector<1x128xf32>
    %169 = vector.broadcast %168 : vector<1x128xf32> to vector<8x128xf32>
    %170 = arith.addf %166, %169 : vector<8x128xf32>
    %c0_72 = arith.constant 0 : index
    %c0_73 = arith.constant 0 : index
    %c0_74 = arith.constant 0 : index
    %171 = vector.load %arg18[%c0_72, %c0_73, %c0_74] : memref<1x8x128xf32, #tpu.memory_space<vmem>>, vector<1x8x128xf32>
    %172 = vector.shape_cast %171 : vector<1x8x128xf32> to vector<8x128xf32>
    %173 = vector.shape_cast %170 : vector<8x128xf32> to vector<1x8x128xf32>
    tpu.vector_store %arg18[%c0_72, %c0_73, %c0_74], %173 {strides = array<i32>} : memref<1x8x128xf32, #tpu.memory_space<vmem>>, vector<1x8x128xf32>,
    return
  }
  func.func @transform_0(%arg0: i32) -> (i32, i32) {
    %c0_i32 = arith.constant 0 : i32
    %c0_i32_0 = arith.constant 0 : i32
    %c0_i32_1 = arith.constant 0 : i32
    return %c0_i32, %c0_i32_0 : i32, i32
  }
  func.func @transform_1(%arg0: i32) -> (i32, i32, i32) {
    %c0_i32 = arith.constant 0 : i32
    %c0_i32_0 = arith.constant 0 : i32
    %c0_i32_1 = arith.constant 0 : i32
    return %arg0, %c0_i32, %c0_i32_0 : i32, i32, i32
  }
  func.func @transform_2(%arg0: i32) -> (i32, i32, i32) {
    %c0_i32 = arith.constant 0 : i32
    %c0_i32_0 = arith.constant 0 : i32
    %c0_i32_1 = arith.constant 0 : i32
    return %arg0, %c0_i32, %c0_i32_0 : i32, i32, i32
  }
  func.func @transform_3(%arg0: i32) -> (i32, i32, i32) {
    %c0_i32 = arith.constant 0 : i32
    %c0_i32_0 = arith.constant 0 : i32
    %c0_i32_1 = arith.constant 0 : i32
    return %arg0, %c0_i32, %c0_i32_0 : i32, i32, i32
  }
  func.func @transform_4(%arg0: i32) -> (i32, i32, i32) {
    %c1_i32 = arith.constant 1 : i32
    %0 = arith.subi %c1_i32, %arg0 : i32
    %c0_i32 = arith.constant 0 : i32
    %c0_i32_0 = arith.constant 0 : i32
    %c0_i32_1 = arith.constant 0 : i32
    return %0, %c0_i32, %c0_i32_0 : i32, i32, i32
  }
  func.func @transform_5(%arg0: i32) -> (i32, i32, i32) {
    %c0_i32 = arith.constant 0 : i32
    %c0_i32_0 = arith.constant 0 : i32
    %c0_i32_1 = arith.constant 0 : i32
    return %arg0, %c0_i32, %c0_i32_0 : i32, i32, i32
  }
  func.func @transform_6(%arg0: i32) -> (i32, i32, i32) {
    %c0_i32 = arith.constant 0 : i32
    %c0_i32_0 = arith.constant 0 : i32
    %c0_i32_1 = arith.constant 0 : i32
    return %arg0, %c0_i32, %c0_i32_0 : i32, i32, i32
  }
  func.func @transform_7(%arg0: i32) -> (i32, i32, i32) {
    %c0_i32 = arith.constant 0 : i32
    %c0_i32_0 = arith.constant 0 : i32
    %c0_i32_1 = arith.constant 0 : i32
    return %arg0, %c0_i32, %c0_i32_0 : i32, i32, i32
  }
  func.func @transform_8(%arg0: i32) -> (i32, i32, i32) {
    %c0_i32 = arith.constant 0 : i32
    %c0_i32_0 = arith.constant 0 : i32
    %c0_i32_1 = arith.constant 0 : i32
    return %arg0, %c0_i32, %c0_i32_0 : i32, i32, i32
  }
  func.func @transform_9(%arg0: i32) -> (i32, i32, i32) {
    %c0_i32 = arith.constant 0 : i32
    %c0_i32_0 = arith.constant 0 : i32
    %c0_i32_1 = arith.constant 0 : i32
    return %arg0, %c0_i32, %c0_i32_0 : i32, i32, i32
  }
  func.func @transform_10(%arg0: i32) -> (i32, i32, i32) {
    %c1_i32 = arith.constant 1 : i32
    %0 = arith.subi %c1_i32, %arg0 : i32
    %c0_i32 = arith.constant 0 : i32
    %c0_i32_0 = arith.constant 0 : i32
    %c0_i32_1 = arith.constant 0 : i32
    return %0, %c0_i32, %c0_i32_0 : i32, i32, i32
  }
  func.func @transform_11(%arg0: i32) -> (i32, i32, i32) {
    %c0_i32 = arith.constant 0 : i32
    %c0_i32_0 = arith.constant 0 : i32
    %c0_i32_1 = arith.constant 0 : i32
    return %arg0, %c0_i32, %c0_i32_0 : i32, i32, i32
  }
  func.func @transform_12(%arg0: i32) -> (i32, i32, i32) {
    %c0_i32 = arith.constant 0 : i32
    %c0_i32_0 = arith.constant 0 : i32
    %c0_i32_1 = arith.constant 0 : i32
    return %arg0, %c0_i32, %c0_i32_0 : i32, i32, i32
  }
  func.func @transform_13(%arg0: i32) -> (i32, i32, i32) {
    %c0_i32 = arith.constant 0 : i32
    %c0_i32_0 = arith.constant 0 : i32
    %c0_i32_1 = arith.constant 0 : i32
    return %arg0, %c0_i32, %c0_i32_0 : i32, i32, i32
  }
  func.func @transform_14(%arg0: i32) -> (i32, i32, i32) {
    %c0_i32 = arith.constant 0 : i32
    %c0_i32_0 = arith.constant 0 : i32
    %c0_i32_1 = arith.constant 0 : i32
    return %arg0, %c0_i32, %c0_i32_0 : i32, i32, i32
  }
  func.func @transform_15(%arg0: i32) -> (i32, i32, i32) {
    %c0_i32 = arith.constant 0 : i32
    %c0_i32_0 = arith.constant 0 : i32
    %c0_i32_1 = arith.constant 0 : i32
    return %arg0, %c0_i32, %c0_i32_0 : i32, i32, i32
  }
  func.func @transform_16(%arg0: i32) -> (i32, i32, i32) {
    %c0_i32 = arith.constant 0 : i32
    %c0_i32_0 = arith.constant 0 : i32
    %c0_i32_1 = arith.constant 0 : i32
    return %arg0, %c0_i32, %c0_i32_0 : i32, i32, i32
  }
  func.func @transform_17(%arg0: i32) -> (i32, i32, i32) {
    %c0_i32 = arith.constant 0 : i32
    %c0_i32_0 = arith.constant 0 : i32
    %c0_i32_1 = arith.constant 0 : i32
    return %arg0, %c0_i32, %c0_i32_0 : i32, i32, i32
  }
}

</mosaic_0001>

<llo_original>
// kernel: tpu_custom_call.1
$region0: #{tpu_custom_call.1}
  #allocation0 [shape = 'u32[]', space=smem, size = 0x4, offset = 0x4, fixed_abs, tag = 'smem constant byte address 0x4 - core index']
  #allocation1 [shape = 'u32[144,128]{1,0:T(1,128)}', space=vmem, size = 0x12000, scoped, tag = 'internal scratch']
  %s0 = inlined_call_operand.vmem [shape: f32[24,16], index: 0, kind: input, shape index: {}]
  %s1 = inlined_call_operand.vmem [shape: f32[2,16,128], index: 1, kind: input, shape index: {}]
  %s2 = inlined_call_operand.vmem [shape: f32[2,1,128], index: 2, kind: input, shape index: {}]
  %s3 = inlined_call_operand.vmem [shape: bf16[2,16,24], index: 3, kind: input, shape index: {}]
  %s4 = inlined_call_operand.vmem [shape: bf16[2,16,24], index: 4, kind: input, shape index: {}]
  %s5 = inlined_call_operand.vmem [shape: f32[2,16,1], index: 5, kind: input, shape index: {}]
  %s6 = inlined_call_operand.hbm [shape: f32[2,128,128], index: 6, kind: input, shape index: {}]
  %s7 = inlined_call_operand.hbm [shape: f32[2,128,128], index: 7, kind: input, shape index: {}]
  %s8 = inlined_call_operand.vmem [shape: f32[2,1,128], index: 8, kind: input, shape index: {}]
  %s9 = inlined_call_operand.vmem [shape: bf16[2,8,16], index: 9, kind: input, shape index: {}]
  %s10 = inlined_call_operand.vmem [shape: bf16[2,8,16], index: 10, kind: input, shape index: {}]
  %s11 = inlined_call_operand.vmem [shape: f32[2,8,1], index: 11, kind: input, shape index: {}]
  %s12 = inlined_call_operand.hbm [shape: f32[2,128,128], index: 12, kind: input, shape index: {}]
  %s13 = inlined_call_operand.hbm [shape: f32[2,128,128], index: 13, kind: input, shape index: {}]
  %s14 = inlined_call_operand.vmem [shape: f32[2,1,128], index: 14, kind: input, shape index: {}]
  %s15 = inlined_call_operand.hbm [shape: f32[2,128,128], index: 15, kind: input, shape index: {}]
  %s16 = inlined_call_operand.vmem [shape: f32[2,1,128], index: 16, kind: input, shape index: {}]
  %s17 = inlined_call_operand.hbm [shape: f32[2,8,128], index: 17, kind: output, shape index: {}]
  %s18 = sld [smem:[#allocation0]]
  $region121: #{tpu_custom_call.1} parent=0
    _
  %s20 = ssub.s32 1, %s18
  %s21 = scalar_select 0, %s20, %s18
  $region1: #{tpu_custom_call.1} parent=0
    #allocation2 [shape = 'u8[131072]{0}', space=vmem, size = 0x20000, scoped, tag = 'input window, operand 6']
    #allocation3 [shape = 's32[2]{0}', space=sflag, size = 0x8, scoped, tag = 'scoped memory for tpu_custom_call.1']
    #allocation4 [shape = 's32[2]{0}', space=sflag, size = 0x8, scoped, tag = 'scoped memory for tpu_custom_call.1']
    #allocation5 [shape = 'u8[131072]{0}', space=vmem, size = 0x20000, scoped, tag = 'input window, operand 7']
    #allocation6 [shape = 's32[2]{0}', space=sflag, size = 0x8, scoped, tag = 'scoped memory for tpu_custom_call.1']
    #allocation7 [shape = 'u8[131072]{0}', space=vmem, size = 0x20000, scoped, tag = 'input window, operand 12']
    #allocation8 [shape = 'u8[131072]{0}', space=vmem, size = 0x20000, scoped, tag = 'input window, operand 13']
    #allocation9 [shape = 's32[2]{0}', space=sflag, size = 0x8, scoped, tag = 'scoped memory for tpu_custom_call.1']
    #allocation10 [shape = 'u8[131072]{0}', space=vmem, size = 0x20000, scoped, tag = 'input window, operand 15']
    #allocation11 [shape = 'u8[8192]{0}', space=vmem, size = 0x2000, scoped, tag = 'output window, operand 0']
    %22 = vsyncpa [#allocation3], 0
    %s23 = scalar_lea.sflag [#allocation3], 1
    %24 = vsyncpa %s23, 0
    %25 = vsyncpa [#allocation6], 0
    %s26 = scalar_lea.sflag [#allocation6], 1
    %27 = vsyncpa %s26, 0
    %28 = vsyncpa [#allocation9], 0
    %s29 = scalar_lea.sflag [#allocation9], 1
    %30 = vsyncpa %s29, 0
    %31 = vsyncpa [#allocation4], 0
    %s32 = scalar_lea.sflag [#allocation4], 1
    %33 = vsyncpa %s32, 0
    loop: start=0, step=1, limit=4
    $region2: #{tpu_custom_call.1} parent=1 // loop_pre_header
      _
    $region3: #{tpu_custom_call.1} parent=1 // loop_header
      %s35 = sphi 0, %s39
      %p36 = scmp.ge.s32.totalorder %s35, 4
      %s43 = sphi 0, %s43
      %s45 = sphi 0, %s43
      %s46 = sphi 0, %s45
      %s60 = sphi 0, %s46
      %s66 = sphi 0, %s68
      %s69 = sphi 0, %s66
      %s70 = sphi 0, %s69
      %s86 = sphi 0, %s70
      %s92 = sphi 0, %s94
      %s95 = sphi 0, %s92
      %s96 = sphi 0, %s95
      %s112 = sphi 0, %s96
      %s118 = sphi 0, %s120
      %s121 = sphi 0, %s118
      %s122 = sphi 0, %s121
      %s138 = sphi 0, %s122
      %s146 = sphi 0, %s148
      %s149 = sphi 0, %s146
      %s150 = sphi 0, %s149
      %s166 = sphi 0, %s150
      %s172 = sphi 0, %s174
      %s175 = sphi 0, %s172
      %s176 = sphi 0, %s175
      %s192 = sphi 0, %s176
      %s198 = sphi 0, %s200
      %s201 = sphi 0, %s198
      %s202 = sphi 0, %s201
      %s218 = sphi 0, %s202
      %s224 = sphi 0, %s226
      %s227 = sphi 0, %s224
      %s228 = sphi 0, %s227
      %s244 = sphi 0, %s228
      %s250 = sphi 0, %s252
      %s253 = sphi 0, %s250
      %s254 = sphi 0, %s253
      %s270 = sphi 0, %s254
      %s276 = sphi 0, %s278
      %s279 = sphi 0, %s276
      %s280 = sphi 0, %s279
      %s296 = sphi 0, %s280
      %s304 = sphi 0, %s306
      %s307 = sphi 0, %s304
      %s308 = sphi 0, %s307
      %s324 = sphi 0, %s308
      %s330 = sphi 0, %s332
      %s333 = sphi 0, %s330
      %s334 = sphi 0, %s333
      %s350 = sphi 0, %s334
      %s356 = sphi 0, %s358
      %s359 = sphi 0, %s356
      %s360 = sphi 0, %s359
      %s376 = sphi 0, %s360
      %s382 = sphi 0, %s384
      %s385 = sphi 0, %s382
      %s386 = sphi 0, %s385
      %s402 = sphi 0, %s386
      %s408 = sphi 0, %s410
      %s411 = sphi 0, %s408
      %s412 = sphi 0, %s411
      %s428 = sphi 0, %s412
      %s434 = sphi 0, %s436
      %s437 = sphi 0, %s434
      %s438 = sphi 0, %s437
      %s454 = sphi 0, %s438
      %s460 = sphi 0, %s462
      %s463 = sphi 0, %s460
      %s464 = sphi 0, %s463
      %s480 = sphi 0, %s464
      %s486 = sphi 0, %s488
      %s489 = sphi 0, %s486
      %s490 = sphi 0, %s489
      %s506 = sphi 0, %s490
    $region4: #{tpu_custom_call.1} parent=1 // loop_header_branch
      %38 = sbr.rel (%p36) target = $region8
    $region5: #{tpu_custom_call.1} parent=1 // loop_body
      %s40 = ssub.s32 %s35, 1
      %s41 = ssub.s32 %s35, 2
      %s42 = sadd.s32 %s35, 1
      %s44 = sadd.s32 %s43, 1
      %p47 = scmp.eq.s32.totalorder %s35, 1
      %p48 = scmp.ne.s32.totalorder %s43, %s45
      %p49 = scmp.eq.s32.totalorder %s35, 0
      %p50 = por %p48, %p49
      %p51 = scmp.ne.s32.totalorder %s43, %s45
      %p52 = scmp.eq.s32.totalorder %s40, 1
      %p53 = por %p51, %p52
      %p54 = scmp.ne.s32.totalorder %s45, %s46
      %p55 = scmp.eq.s32.totalorder %s40, 0
      %p56 = por %p54, %p55
      %p57 = scmp.ne.s32.totalorder %s45, %s46
      %p58 = scmp.eq.s32.totalorder %s41, 1
      %p59 = por %p57, %p58
      %p61 = scmp.ne.s32.totalorder %s46, %s60
      %p62 = scmp.eq.s32.totalorder %s41, 0
      %p63 = por %p61, %p62
      %s64 = ssub.s32 %s35, %s42
      %p65 = scmp.eq.s32.totalorder %s64, 0
      %s67 = sadd.s32 %s66, 1
      %s68 = scalar_select %p65, %s66, %s67
      %p71 = pneg %p65
      %p72 = scmp.eq.s32.totalorder %s35, 1
      %p73 = por %p71, %p72
      %p74 = scmp.ne.s32.totalorder %s66, %s69
      %p75 = scmp.eq.s32.totalorder %s35, 0
      %p76 = por %p74, %p75
      %p77 = scmp.ne.s32.totalorder %s66, %s69
      %p78 = scmp.eq.s32.totalorder %s40, 1
      %p79 = por %p77, %p78
      %p80 = scmp.ne.s32.totalorder %s69, %s70
      %p81 = scmp.eq.s32.totalorder %s40, 0
      %p82 = por %p80, %p81
      %p83 = scmp.ne.s32.totalorder %s69, %s70
      %p84 = scmp.eq.s32.totalorder %s41, 1
      %p85 = por %p83, %p84
      %p87 = scmp.ne.s32.totalorder %s70, %s86
      %p88 = scmp.eq.s32.totalorder %s41, 0
      %p89 = por %p87, %p88
      %s90 = ssub.s32 %s35, %s42
      %p91 = scmp.eq.s32.totalorder %s90, 0
      %s93 = sadd.s32 %s92, 1
      %s94 = scalar_select %p91, %s92, %s93
      %p97 = pneg %p91
      %p98 = scmp.eq.s32.totalorder %s35, 1
      %p99 = por %p97, %p98
      %p100 = scmp.ne.s32.totalorder %s92, %s95
      %p101 = scmp.eq.s32.totalorder %s35, 0
      %p102 = por %p100, %p101
      %p103 = scmp.ne.s32.totalorder %s92, %s95
      %p104 = scmp.eq.s32.totalorder %s40, 1
      %p105 = por %p103, %p104
      %p106 = scmp.ne.s32.totalorder %s95, %s96
      %p107 = scmp.eq.s32.totalorder %s40, 0
      %p108 = por %p106, %p107
      %p109 = scmp.ne.s32.totalorder %s95, %s96
      %p110 = scmp.eq.s32.totalorder %s41, 1
      %p111 = por %p109, %p110
      %p113 = scmp.ne.s32.totalorder %s96, %s112
      %p114 = scmp.eq.s32.totalorder %s41, 0
      %p115 = por %p113, %p114
      %s116 = ssub.s32 %s35, %s42
      %p117 = scmp.eq.s32.totalorder %s116, 0
      %s119 = sadd.s32 %s118, 1
      %s120 = scalar_select %p117, %s118, %s119
      %p123 = pneg %p117
      %p124 = scmp.eq.s32.totalorder %s35, 1
      %p125 = por %p123, %p124
      %p126 = scmp.ne.s32.totalorder %s118, %s121
      %p127 = scmp.eq.s32.totalorder %s35, 0
      %p128 = por %p126, %p127
      %p129 = scmp.ne.s32.totalorder %s118, %s121
      %p130 = scmp.eq.s32.totalorder %s40, 1
      %p131 = por %p129, %p130
      %p132 = scmp.ne.s32.totalorder %s121, %s122
      %p133 = scmp.eq.s32.totalorder %s40, 0
      %p134 = por %p132, %p133
      %p135 = scmp.ne.s32.totalorder %s121, %s122
      %p136 = scmp.eq.s32.totalorder %s41, 1
      %p137 = por %p135, %p136
      %p139 = scmp.ne.s32.totalorder %s122, %s138
      %p140 = scmp.eq.s32.totalorder %s41, 0
      %p141 = por %p139, %p140
      %s142 = ssub.s32 1, %s35
      %s143 = ssub.s32 1, %s42
      %s144 = ssub.s32 %s142, %s143
      %p145 = scmp.eq.s32.totalorder %s144, 0
      %s147 = sadd.s32 %s146, 1
      %s148 = scalar_select %p145, %s146, %s147
      %p151 = pneg %p145
      %p152 = scmp.eq.s32.totalorder %s35, 1
      %p153 = por %p151, %p152
      %p154 = scmp.ne.s32.totalorder %s146, %s149
      %p155 = scmp.eq.s32.totalorder %s35, 0
      %p156 = por %p154, %p155
      %p157 = scmp.ne.s32.totalorder %s146, %s149
      %p158 = scmp.eq.s32.totalorder %s40, 1
      %p159 = por %p157, %p158
      %p160 = scmp.ne.s32.totalorder %s149, %s150
      %p161 = scmp.eq.s32.totalorder %s40, 0
      %p162 = por %p160, %p161
      %p163 = scmp.ne.s32.totalorder %s149, %s150
      %p164 = scmp.eq.s32.totalorder %s41, 1
      %p165 = por %p163, %p164
      %p167 = scmp.ne.s32.totalorder %s150, %s166
      %p168 = scmp.eq.s32.totalorder %s41, 0
      %p169 = por %p167, %p168
      %s170 = ssub.s32 %s35, %s42
      %p171 = scmp.eq.s32.totalorder %s170, 0
      %s173 = sadd.s32 %s172, 1
      %s174 = scalar_select %p171, %s172, %s173
      %p177 = pneg %p171
      %p178 = scmp.eq.s32.totalorder %s35, 1
      %p179 = por %p177, %p178
      %p180 = scmp.ne.s32.totalorder %s172, %s175
      %p181 = scmp.eq.s32.totalorder %s35, 0
      %p182 = por %p180, %p181
      %p183 = scmp.ne.s32.totalorder %s172, %s175
      %p184 = scmp.eq.s32.totalorder %s40, 1
      %p185 = por %p183, %p184
      %p186 = scmp.ne.s32.totalorder %s175, %s176
      %p187 = scmp.eq.s32.totalorder %s40, 0
      %p188 = por %p186, %p187
      %p189 = scmp.ne.s32.totalorder %s175, %s176
      %p190 = scmp.eq.s32.totalorder %s41, 1
      %p191 = por %p189, %p190
      %p193 = scmp.ne.s32.totalorder %s176, %s192
      %p194 = scmp.eq.s32.totalorder %s41, 0
      %p195 = por %p193, %p194
      %s196 = ssub.s32 %s35, %s42
      %p197 = scmp.eq.s32.totalorder %s196, 0
      %s199 = sadd.s32 %s198, 1
      %s200 = scalar_select %p197, %s198, %s199
      %p203 = pneg %p197
      %p204 = scmp.eq.s32.totalorder %s35, 1
      %p205 = por %p203, %p204
      %p206 = scmp.ne.s32.totalorder %s198, %s201
      %p207 = scmp.eq.s32.totalorder %s35, 0
      %p208 = por %p206, %p207
      %p209 = scmp.ne.s32.totalorder %s198, %s201
      %p210 = scmp.eq.s32.totalorder %s40, 1
      %p211 = por %p209, %p210
      %p212 = scmp.ne.s32.totalorder %s201, %s202
      %p213 = scmp.eq.s32.totalorder %s40, 0
      %p214 = por %p212, %p213
      %p215 = scmp.ne.s32.totalorder %s201, %s202
      %p216 = scmp.eq.s32.totalorder %s41, 1
      %p217 = por %p215, %p216
      %p219 = scmp.ne.s32.totalorder %s202, %s218
      %p220 = scmp.eq.s32.totalorder %s41, 0
      %p221 = por %p219, %p220
      %s222 = ssub.s32 %s35, %s42
      %p223 = scmp.eq.s32.totalorder %s222, 0
      %s225 = sadd.s32 %s224, 1
      %s226 = scalar_select %p223, %s224, %s225
      %p229 = pneg %p223
      %p230 = scmp.eq.s32.totalorder %s35, 1
      %p231 = por %p229, %p230
      %p232 = scmp.ne.s32.totalorder %s224, %s227
      %p233 = scmp.eq.s32.totalorder %s35, 0
      %p234 = por %p232, %p233
      %p235 = scmp.ne.s32.totalorder %s224, %s227
      %p236 = scmp.eq.s32.totalorder %s40, 1
      %p237 = por %p235, %p236
      %p238 = scmp.ne.s32.totalorder %s227, %s228
      %p239 = scmp.eq.s32.totalorder %s40, 0
      %p240 = por %p238, %p239
      %p241 = scmp.ne.s32.totalorder %s227, %s228
      %p242 = scmp.eq.s32.totalorder %s41, 1
      %p243 = por %p241, %p242
      %p245 = scmp.ne.s32.totalorder %s228, %s244
      %p246 = scmp.eq.s32.totalorder %s41, 0
      %p247 = por %p245, %p246
      %s248 = ssub.s32 %s35, %s42
      %p249 = scmp.eq.s32.totalorder %s248, 0
      %s251 = sadd.s32 %s250, 1
      %s252 = scalar_select %p249, %s250, %s251
      %p255 = pneg %p249
      %p256 = scmp.eq.s32.totalorder %s35, 1
      %p257 = por %p255, %p256
      %p258 = scmp.ne.s32.totalorder %s250, %s253
      %p259 = scmp.eq.s32.totalorder %s35, 0
      %p260 = por %p258, %p259
      %p261 = scmp.ne.s32.totalorder %s250, %s253
      %p262 = scmp.eq.s32.totalorder %s40, 1
      %p263 = por %p261, %p262
      %p264 = scmp.ne.s32.totalorder %s253, %s254
      %p265 = scmp.eq.s32.totalorder %s40, 0
      %p266 = por %p264, %p265
      %p267 = scmp.ne.s32.totalorder %s253, %s254
      %p268 = scmp.eq.s32.totalorder %s41, 1
      %p269 = por %p267, %p268
      %p271 = scmp.ne.s32.totalorder %s254, %s270
      %p272 = scmp.eq.s32.totalorder %s41, 0
      %p273 = por %p271, %p272
      %s274 = ssub.s32 %s35, %s42
      %p275 = scmp.eq.s32.totalorder %s274, 0
      %s277 = sadd.s32 %s276, 1
      %s278 = scalar_select %p275, %s276, %s277
      %p281 = pneg %p275
      %p282 = scmp.eq.s32.totalorder %s35, 1
      %p283 = por %p281, %p282
      %p284 = scmp.ne.s32.totalorder %s276, %s279
      %p285 = scmp.eq.s32.totalorder %s35, 0
      %p286 = por %p284, %p285
      %p287 = scmp.ne.s32.totalorder %s276, %s279
      %p288 = scmp.eq.s32.totalorder %s40, 1
      %p289 = por %p287, %p288
      %p290 = scmp.ne.s32.totalorder %s279, %s280
      %p291 = scmp.eq.s32.totalorder %s40, 0
      %p292 = por %p290, %p291
      %p293 = scmp.ne.s32.totalorder %s279, %s280
      %p294 = scmp.eq.s32.totalorder %s41, 1
      %p295 = por %p293, %p294
      %p297 = scmp.ne.s32.totalorder %s280, %s296
      %p298 = scmp.eq.s32.totalorder %s41, 0
      %p299 = por %p297, %p298
      %s300 = ssub.s32 1, %s35
      %s301 = ssub.s32 1, %s42
      %s302 = ssub.s32 %s300, %s301
      %p303 = scmp.eq.s32.totalorder %s302, 0
      %s305 = sadd.s32 %s304, 1
      %s306 = scalar_select %p303, %s304, %s305
      %p309 = pneg %p303
      %p310 = scmp.eq.s32.totalorder %s35, 1
      %p311 = por %p309, %p310
      %p312 = scmp.ne.s32.totalorder %s304, %s307
      %p313 = scmp.eq.s32.totalorder %s35, 0
      %p314 = por %p312, %p313
      %p315 = scmp.ne.s32.totalorder %s304, %s307
      %p316 = scmp.eq.s32.totalorder %s40, 1
      %p317 = por %p315, %p316
      %p318 = scmp.ne.s32.totalorder %s307, %s308
      %p319 = scmp.eq.s32.totalorder %s40, 0
      %p320 = por %p318, %p319
      %p321 = scmp.ne.s32.totalorder %s307, %s308
      %p322 = scmp.eq.s32.totalorder %s41, 1
      %p323 = por %p321, %p322
      %p325 = scmp.ne.s32.totalorder %s308, %s324
      %p326 = scmp.eq.s32.totalorder %s41, 0
      %p327 = por %p325, %p326
      %s328 = ssub.s32 %s35, %s42
      %p329 = scmp.eq.s32.totalorder %s328, 0
      %s331 = sadd.s32 %s330, 1
      %s332 = scalar_select %p329, %s330, %s331
      %p335 = pneg %p329
      %p336 = scmp.eq.s32.totalorder %s35, 1
      %p337 = por %p335, %p336
      %p338 = scmp.ne.s32.totalorder %s330, %s333
      %p339 = scmp.eq.s32.totalorder %s35, 0
      %p340 = por %p338, %p339
      %p341 = scmp.ne.s32.totalorder %s330, %s333
      %p342 = scmp.eq.s32.totalorder %s40, 1
      %p343 = por %p341, %p342
      %p344 = scmp.ne.s32.totalorder %s333, %s334
      %p345 = scmp.eq.s32.totalorder %s40, 0
      %p346 = por %p344, %p345
      %p347 = scmp.ne.s32.totalorder %s333, %s334
      %p348 = scmp.eq.s32.totalorder %s41, 1
      %p349 = por %p347, %p348
      %p351 = scmp.ne.s32.totalorder %s334, %s350
      %p352 = scmp.eq.s32.totalorder %s41, 0
      %p353 = por %p351, %p352
      %s354 = ssub.s32 %s35, %s42
      %p355 = scmp.eq.s32.totalorder %s354, 0
      %s357 = sadd.s32 %s356, 1
      %s358 = scalar_select %p355, %s356, %s357
      %p361 = pneg %p355
      %p362 = scmp.eq.s32.totalorder %s35, 1
      %p363 = por %p361, %p362
      %p364 = scmp.ne.s32.totalorder %s356, %s359
      %p365 = scmp.eq.s32.totalorder %s35, 0
      %p366 = por %p364, %p365
      %p367 = scmp.ne.s32.totalorder %s356, %s359
      %p368 = scmp.eq.s32.totalorder %s40, 1
      %p369 = por %p367, %p368
      %p370 = scmp.ne.s32.totalorder %s359, %s360
      %p371 = scmp.eq.s32.totalorder %s40, 0
      %p372 = por %p370, %p371
      %p373 = scmp.ne.s32.totalorder %s359, %s360
      %p374 = scmp.eq.s32.totalorder %s41, 1
      %p375 = por %p373, %p374
      %p377 = scmp.ne.s32.totalorder %s360, %s376
      %p378 = scmp.eq.s32.totalorder %s41, 0
      %p379 = por %p377, %p378
      %s380 = ssub.s32 %s35, %s42
      %p381 = scmp.eq.s32.totalorder %s380, 0
      %s383 = sadd.s32 %s382, 1
      %s384 = scalar_select %p381, %s382, %s383
      %p387 = pneg %p381
      %p388 = scmp.eq.s32.totalorder %s35, 1
      %p389 = por %p387, %p388
      %p390 = scmp.ne.s32.totalorder %s382, %s385
      %p391 = scmp.eq.s32.totalorder %s35, 0
      %p392 = por %p390, %p391
      %p393 = scmp.ne.s32.totalorder %s382, %s385
      %p394 = scmp.eq.s32.totalorder %s40, 1
      %p395 = por %p393, %p394
      %p396 = scmp.ne.s32.totalorder %s385, %s386
      %p397 = scmp.eq.s32.totalorder %s40, 0
      %p398 = por %p396, %p397
      %p399 = scmp.ne.s32.totalorder %s385, %s386
      %p400 = scmp.eq.s32.totalorder %s41, 1
      %p401 = por %p399, %p400
      %p403 = scmp.ne.s32.totalorder %s386, %s402
      %p404 = scmp.eq.s32.totalorder %s41, 0
      %p405 = por %p403, %p404
      %s406 = ssub.s32 %s35, %s42
      %p407 = scmp.eq.s32.totalorder %s406, 0
      %s409 = sadd.s32 %s408, 1
      %s410 = scalar_select %p407, %s408, %s409
      %p413 = pneg %p407
      %p414 = scmp.eq.s32.totalorder %s35, 1
      %p415 = por %p413, %p414
      %p416 = scmp.ne.s32.totalorder %s408, %s411
      %p417 = scmp.eq.s32.totalorder %s35, 0
      %p418 = por %p416, %p417
      %p419 = scmp.ne.s32.totalorder %s408, %s411
      %p420 = scmp.eq.s32.totalorder %s40, 1
      %p421 = por %p419, %p420
      %p422 = scmp.ne.s32.totalorder %s411, %s412
      %p423 = scmp.eq.s32.totalorder %s40, 0
      %p424 = por %p422, %p423
      %p425 = scmp.ne.s32.totalorder %s411, %s412
      %p426 = scmp.eq.s32.totalorder %s41, 1
      %p427 = por %p425, %p426
      %p429 = scmp.ne.s32.totalorder %s412, %s428
      %p430 = scmp.eq.s32.totalorder %s41, 0
      %p431 = por %p429, %p430
      %s432 = ssub.s32 %s35, %s42
      %p433 = scmp.eq.s32.totalorder %s432, 0
      %s435 = sadd.s32 %s434, 1
      %s436 = scalar_select %p433, %s434, %s435
      %p439 = pneg %p433
      %p440 = scmp.eq.s32.totalorder %s35, 1
      %p441 = por %p439, %p440
      %p442 = scmp.ne.s32.totalorder %s434, %s437
      %p443 = scmp.eq.s32.totalorder %s35, 0
      %p444 = por %p442, %p443
      %p445 = scmp.ne.s32.totalorder %s434, %s437
      %p446 = scmp.eq.s32.totalorder %s40, 1
      %p447 = por %p445, %p446
      %p448 = scmp.ne.s32.totalorder %s437, %s438
      %p449 = scmp.eq.s32.totalorder %s40, 0
      %p450 = por %p448, %p449
      %p451 = scmp.ne.s32.totalorder %s437, %s438
      %p452 = scmp.eq.s32.totalorder %s41, 1
      %p453 = por %p451, %p452
      %p455 = scmp.ne.s32.totalorder %s438, %s454
      %p456 = scmp.eq.s32.totalorder %s41, 0
      %p457 = por %p455, %p456
      %s458 = ssub.s32 %s35, %s42
      %p459 = scmp.eq.s32.totalorder %s458, 0
      %s461 = sadd.s32 %s460, 1
      %s462 = scalar_select %p459, %s460, %s461
      %p465 = pneg %p459
      %p466 = scmp.eq.s32.totalorder %s35, 1
      %p467 = por %p465, %p466
      %p468 = scmp.ne.s32.totalorder %s460, %s463
      %p469 = scmp.eq.s32.totalorder %s35, 0
      %p470 = por %p468, %p469
      %p471 = scmp.ne.s32.totalorder %s460, %s463
      %p472 = scmp.eq.s32.totalorder %s40, 1
      %p473 = por %p471, %p472
      %p474 = scmp.ne.s32.totalorder %s463, %s464
      %p475 = scmp.eq.s32.totalorder %s40, 0
      %p476 = por %p474, %p475
      %p477 = scmp.ne.s32.totalorder %s463, %s464
      %p478 = scmp.eq.s32.totalorder %s41, 1
      %p479 = por %p477, %p478
      %p481 = scmp.ne.s32.totalorder %s464, %s480
      %p482 = scmp.eq.s32.totalorder %s41, 0
      %p483 = por %p481, %p482
      %s484 = ssub.s32 %s35, %s42
      %p485 = scmp.eq.s32.totalorder %s484, 0
      %s487 = sadd.s32 %s486, 1
      %s488 = scalar_select %p485, %s486, %s487
      %p491 = pneg %p485
      %p492 = scmp.eq.s32.totalorder %s35, 1
      %p493 = por %p491, %p492
      %p494 = scmp.ne.s32.totalorder %s486, %s489
      %p495 = scmp.eq.s32.totalorder %s35, 0
      %p496 = por %p494, %p495
      %p497 = scmp.ne.s32.totalorder %s486, %s489
      %p498 = scmp.eq.s32.totalorder %s40, 1
      %p499 = por %p497, %p498
      %p500 = scmp.ne.s32.totalorder %s489, %s490
      %p501 = scmp.eq.s32.totalorder %s40, 0
      %p502 = por %p500, %p501
      %p503 = scmp.ne.s32.totalorder %s489, %s490
      %p504 = scmp.eq.s32.totalorder %s41, 1
      %p505 = por %p503, %p504
      %p507 = scmp.ne.s32.totalorder %s490, %s506
      %p508 = scmp.eq.s32.totalorder %s41, 0
      %p509 = por %p507, %p508
      %p510 = scmp.le.s32.totalorder 1, %s35
      %p511 = scmp.lt.s32.totalorder %s35, 3
      %p512 = pnand %p510, %p511
      %p513 = pneg %p512
      // Predicated region
      $region9: #{tpu_custom_call.1} parent=5 // pred_check
        _
      $region10: #{tpu_custom_call.1} parent=5 // pred_check_branch
        %515 = sbr.rel (%p512) target = $region12
      $region11: #{tpu_custom_call.1} parent=5 // pred_region
        %s516 = ssub.s32 %s35, 1
        // Predicated region
        $region13: #{tpu_custom_call.1} parent=11 // pred_check
          %p517 = pneg %p56
        $region14: #{tpu_custom_call.1} parent=11 // pred_check_branch
          %519 = sbr.rel (%p517) target = $region16
        $region15: #{tpu_custom_call.1} parent=11 // pred_region
          _
        $region16: #{tpu_custom_call.1} parent=11 // pred_fallthru
          _
      $region12: #{tpu_custom_call.1} parent=5 // pred_fallthru
        _
      %p520 = scmp.lt.s32.totalorder %s35, 2
      // Predicated region
      $region17: #{tpu_custom_call.1} parent=5 // pred_check
        %p521 = pneg %p520
      $region18: #{tpu_custom_call.1} parent=5 // pred_check_branch
        %523 = sbr.rel (%p521) target = $region20
      $region19: #{tpu_custom_call.1} parent=5 // pred_region
        // Predicated region
        $region21: #{tpu_custom_call.1} parent=19 // pred_check
          %p524 = pneg %p76
        $region22: #{tpu_custom_call.1} parent=19 // pred_check_branch
          %526 = sbr.rel (%p524) target = $region24
        $region23: #{tpu_custom_call.1} parent=19 // pred_region
          %p527 = scmp.lt.s32.totalorder %s35, 1
          %s528 = scalar_select %p527, %s35, 1
          %s529 = smul.addr %s528, 2
          %s530 = smul.addr %s529, 8
          %s531 = scalar_lea.vmem %s1, %s530
        $region24: #{tpu_custom_call.1} parent=19 // pred_fallthru
          _
        // Predicated region
        $region25: #{tpu_custom_call.1} parent=19 // pred_check
          %p532 = pneg %p102
        $region26: #{tpu_custom_call.1} parent=19 // pred_check_branch
          %534 = sbr.rel (%p532) target = $region28
        $region27: #{tpu_custom_call.1} parent=19 // pred_region
          %p535 = scmp.lt.s32.totalorder %s35, 1
          %s536 = scalar_select %p535, %s35, 1
          %s537 = scalar_lea.vmem %s2, %s536
        $region28: #{tpu_custom_call.1} parent=19 // pred_fallthru
          _
        // Predicated region
        $region29: #{tpu_custom_call.1} parent=19 // pred_check
          %p538 = pneg %p128
        $region30: #{tpu_custom_call.1} parent=19 // pred_check_branch
          %540 = sbr.rel (%p538) target = $region32
        $region31: #{tpu_custom_call.1} parent=19 // pred_region
          %p541 = scmp.lt.s32.totalorder %s35, 1
          %s542 = scalar_select %p541, %s35, 1
          %s543 = smul.addr %s542, 2
          %s544 = smul.addr %s543, 4
          %s545 = scalar_lea.vmem %s3, %s544
        $region32: #{tpu_custom_call.1} parent=19 // pred_fallthru
          _
        // Predicated region
        $region33: #{tpu_custom_call.1} parent=19 // pred_check
          %p546 = pneg %p156
        $region34: #{tpu_custom_call.1} parent=19 // pred_check_branch
          %548 = sbr.rel (%p546) target = $region36
        $region35: #{tpu_custom_call.1} parent=19 // pred_region
          %s549 = ssub.s32 1, %s35
          %p550 = scmp.lt.s32.totalorder %s549, 1
          %s551 = scalar_select %p550, %s549, 1
          %s552 = smul.addr %s551, 2
          %s553 = smul.addr %s552, 4
          %s554 = scalar_lea.vmem %s4, %s553
          %s555 = ssub.s32 1, %s35
        $region36: #{tpu_custom_call.1} parent=19 // pred_fallthru
          _
        // Predicated region
        $region37: #{tpu_custom_call.1} parent=19 // pred_check
          %p556 = pneg %p182
        $region38: #{tpu_custom_call.1} parent=19 // pred_check_branch
          %558 = sbr.rel (%p556) target = $region40
        $region39: #{tpu_custom_call.1} parent=19 // pred_region
          %p559 = scmp.lt.s32.totalorder %s35, 1
          %s560 = scalar_select %p559, %s35, 1
          %s561 = smul.addr %s560, 2
          %s562 = smul.addr %s561, 8
          %s563 = scalar_lea.vmem %s5, %s562
        $region40: #{tpu_custom_call.1} parent=19 // pred_fallthru
          _
        // Predicated region
        $region41: #{tpu_custom_call.1} parent=19 // pred_check
          %p564 = pneg %p208
        $region42: #{tpu_custom_call.1} parent=19 // pred_check_branch
          %566 = sbr.rel (%p564) target = $region44
        $region43: #{tpu_custom_call.1} parent=19 // pred_region
          %s567 = sand.u32 %s198, 1
          %s568 = scalar_lea.sflag [#allocation3], %s567
          %s569 = sand.u32 %s198, 1
          %s570 = smul.addr %s569, 128
          %s571 = scalar_lea.vmem [#allocation2], %s570
          %s573 = ssub.s32 2048, 2048
          %574 = vsyncadd %s568, %s573
          %s575 = smul.addr %s35, 16
          %s576 = smul.addr %s575, 128
          %s577 = scalar_lea.hbm %s6, %s576
          %s578 = sshll.u32 %s571, 4
          %s579 = int_to_ptr.vmem [resolvable:$true] %s578
          %584 = dma.hbm_to_vmem [thread:$0]  %s577, 2048, %s579, %s568, 128, 128, 8
        $region44: #{tpu_custom_call.1} parent=19 // pred_fallthru
          _
        // Predicated region
        $region45: #{tpu_custom_call.1} parent=19 // pred_check
          %p585 = pneg %p234
        $region46: #{tpu_custom_call.1} parent=19 // pred_check_branch
          %587 = sbr.rel (%p585) target = $region48
        $region47: #{tpu_custom_call.1} parent=19 // pred_region
          %s588 = sand.u32 %s35, 1
          %s589 = scalar_lea.sflag [#allocation6], %s588
          %s590 = sand.u32 %s224, 1
          %s591 = smul.addr %s590, 128
          %s592 = scalar_lea.vmem [#allocation5], %s591
          %s594 = ssub.s32 2048, 2048
          %595 = vsyncadd %s589, %s594
          %s596 = smul.addr %s35, 16
          %s597 = smul.addr %s596, 128
          %s598 = scalar_lea.hbm %s7, %s597
          %s599 = sshll.u32 %s592, 4
          %s600 = int_to_ptr.vmem [resolvable:$true] %s599
          %605 = dma.hbm_to_vmem [thread:$0]  %s598, 2048, %s600, %s589, 128, 128, 8
        $region48: #{tpu_custom_call.1} parent=19 // pred_fallthru
          _
        // Predicated region
        $region49: #{tpu_custom_call.1} parent=19 // pred_check
          %p606 = pneg %p260
        $region50: #{tpu_custom_call.1} parent=19 // pred_check_branch
          %608 = sbr.rel (%p606) target = $region52
        $region51: #{tpu_custom_call.1} parent=19 // pred_region
          %p609 = scmp.lt.s32.totalorder %s35, 1
          %s610 = scalar_select %p609, %s35, 1
          %s611 = scalar_lea.vmem %s8, %s610
        $region52: #{tpu_custom_call.1} parent=19 // pred_fallthru
          _
        // Predicated region
        $region53: #{tpu_custom_call.1} parent=19 // pred_check
          %p612 = pneg %p286
        $region54: #{tpu_custom_call.1} parent=19 // pred_check_branch
          %614 = sbr.rel (%p612) target = $region56
        $region55: #{tpu_custom_call.1} parent=19 // pred_region
          %p615 = scmp.lt.s32.totalorder %s35, 1
          %s616 = scalar_select %p615, %s35, 1
          %s617 = smul.addr %s616, 4
          %s618 = scalar_lea.vmem %s9, %s617
        $region56: #{tpu_custom_call.1} parent=19 // pred_fallthru
          _
        // Predicated region
        $region57: #{tpu_custom_call.1} parent=19 // pred_check
          %p619 = pneg %p314
        $region58: #{tpu_custom_call.1} parent=19 // pred_check_branch
          %621 = sbr.rel (%p619) target = $region60
        $region59: #{tpu_custom_call.1} parent=19 // pred_region
          %s622 = ssub.s32 1, %s35
          %p623 = scmp.lt.s32.totalorder %s622, 1
          %s624 = scalar_select %p623, %s622, 1
          %s625 = smul.addr %s624, 4
          %s626 = scalar_lea.vmem %s10, %s625
          %s627 = ssub.s32 1, %s35
        $region60: #{tpu_custom_call.1} parent=19 // pred_fallthru
          _
        // Predicated region
        $region61: #{tpu_custom_call.1} parent=19 // pred_check
          %p628 = pneg %p340
        $region62: #{tpu_custom_call.1} parent=19 // pred_check_branch
          %630 = sbr.rel (%p628) target = $region64
        $region63: #{tpu_custom_call.1} parent=19 // pred_region
          %p631 = scmp.lt.s32.totalorder %s35, 1
          %s632 = scalar_select %p631, %s35, 1
          %s633 = smul.addr %s632, 8
          %s634 = scalar_lea.vmem %s11, %s633
        $region64: #{tpu_custom_call.1} parent=19 // pred_fallthru
          _
        // Predicated region
        $region65: #{tpu_custom_call.1} parent=19 // pred_check
          %p635 = pneg %p366
        $region66: #{tpu_custom_call.1} parent=19 // pred_check_branch
          %637 = sbr.rel (%p635) target = $region68
        $region67: #{tpu_custom_call.1} parent=19 // pred_region
          %s638 = sand.u32 %s35, 1
          %s639 = scalar_lea.sflag [#allocation6], %s638
          %s640 = sand.u32 %s356, 1
          %s641 = smul.addr %s640, 128
          %s642 = scalar_lea.vmem [#allocation7], %s641
          %s644 = ssub.s32 2048, 2048
          %645 = vsyncadd %s639, %s644
          %s646 = smul.addr %s35, 16
          %s647 = smul.addr %s646, 128
          %s648 = scalar_lea.hbm %s12, %s647
          %s649 = sshll.u32 %s642, 4
          %s650 = int_to_ptr.vmem [resolvable:$true] %s649
          %655 = dma.hbm_to_vmem [thread:$0]  %s648, 2048, %s650, %s639, 128, 128, 8
        $region68: #{tpu_custom_call.1} parent=19 // pred_fallthru
          _
        // Predicated region
        $region69: #{tpu_custom_call.1} parent=19 // pred_check
          %p656 = pneg %p392
        $region70: #{tpu_custom_call.1} parent=19 // pred_check_branch
          %658 = sbr.rel (%p656) target = $region72
        $region71: #{tpu_custom_call.1} parent=19 // pred_region
          %s659 = sand.u32 %s35, 1
          %s660 = scalar_lea.sflag [#allocation9], %s659
          %s661 = sand.u32 %s382, 1
          %s662 = smul.addr %s661, 128
          %s663 = scalar_lea.vmem [#allocation8], %s662
          %s665 = ssub.s32 2048, 2048
          %666 = vsyncadd %s660, %s665
          %s667 = smul.addr %s35, 16
          %s668 = smul.addr %s667, 128
          %s669 = scalar_lea.hbm %s13, %s668
          %s670 = sshll.u32 %s663, 4
          %s671 = int_to_ptr.vmem [resolvable:$true] %s670
          %676 = dma.hbm_to_vmem [thread:$0]  %s669, 2048, %s671, %s660, 128, 128, 8
        $region72: #{tpu_custom_call.1} parent=19 // pred_fallthru
          _
        // Predicated region
        $region73: #{tpu_custom_call.1} parent=19 // pred_check
          %p677 = pneg %p418
        $region74: #{tpu_custom_call.1} parent=19 // pred_check_branch
          %679 = sbr.rel (%p677) target = $region76
        $region75: #{tpu_custom_call.1} parent=19 // pred_region
          %p680 = scmp.lt.s32.totalorder %s35, 1
          %s681 = scalar_select %p680, %s35, 1
          %s682 = scalar_lea.vmem %s14, %s681
        $region76: #{tpu_custom_call.1} parent=19 // pred_fallthru
          _
        // Predicated region
        $region77: #{tpu_custom_call.1} parent=19 // pred_check
          %p683 = pneg %p444
        $region78: #{tpu_custom_call.1} parent=19 // pred_check_branch
          %685 = sbr.rel (%p683) target = $region80
        $region79: #{tpu_custom_call.1} parent=19 // pred_region
          %s686 = sand.u32 %s35, 1
          %s687 = scalar_lea.sflag [#allocation9], %s686
          %s688 = sand.u32 %s434, 1
          %s689 = smul.addr %s688, 128
          %s690 = scalar_lea.vmem [#allocation10], %s689
          %s692 = ssub.s32 2048, 2048
          %693 = vsyncadd %s687, %s692
          %s694 = smul.addr %s35, 16
          %s695 = smul.addr %s694, 128
          %s696 = scalar_lea.hbm %s15, %s695
          %s697 = sshll.u32 %s690, 4
          %s698 = int_to_ptr.vmem [resolvable:$true] %s697
          %703 = dma.hbm_to_vmem [thread:$0]  %s696, 2048, %s698, %s687, 128, 128, 8
        $region80: #{tpu_custom_call.1} parent=19 // pred_fallthru
          _
        // Predicated region
        $region81: #{tpu_custom_call.1} parent=19 // pred_check
          %p704 = pneg %p470
        $region82: #{tpu_custom_call.1} parent=19 // pred_check_branch
          %706 = sbr.rel (%p704) target = $region84
        $region83: #{tpu_custom_call.1} parent=19 // pred_region
          %p707 = scmp.lt.s32.totalorder %s35, 1
          %s708 = scalar_select %p707, %s35, 1
          %s709 = scalar_lea.vmem %s16, %s708
        $region84: #{tpu_custom_call.1} parent=19 // pred_fallthru
          _
      $region20: #{tpu_custom_call.1} parent=5 // pred_fallthru
        _
      %p710 = scmp.le.s32.totalorder 1, %s35
      %p711 = scmp.lt.s32.totalorder %s35, 3
      %p712 = pnand %p710, %p711
      %p713 = pneg %p712
      // Predicated region
      $region85: #{tpu_custom_call.1} parent=5 // pred_check
        _
      $region86: #{tpu_custom_call.1} parent=5 // pred_check_branch
        %715 = sbr.rel (%p712) target = $region88
      $region87: #{tpu_custom_call.1} parent=5 // pred_region
        %s716 = ssub.s32 %s35, 1
        %s717 = sand.u32 %s201, 1
        %s718 = scalar_lea.sflag [#allocation3], %s717
        %s719 = sand.u32 %s201, 1
        %s720 = smul.addr %s719, 128
        %s721 = scalar_lea.vmem [#allocation2], %s720
        // Predicated region
        $region89: #{tpu_custom_call.1} parent=87 // pred_check
          %p722 = pneg %p214
        $region90: #{tpu_custom_call.1} parent=87 // pred_check_branch
          %724 = sbr.rel (%p722) target = $region92
        $region91: #{tpu_custom_call.1} parent=87 // pred_region
          %725 = dma.done %s718, 2048
        $region92: #{tpu_custom_call.1} parent=87 // pred_fallthru
          _
        %s726 = sand.u32 %s40, 1
        %s727 = scalar_lea.sflag [#allocation6], %s726
        %s728 = sand.u32 %s227, 1
        %s729 = smul.addr %s728, 128
        %s730 = scalar_lea.vmem [#allocation5], %s729
        // Predicated region
        $region93: #{tpu_custom_call.1} parent=87 // pred_check
          %p731 = pneg %p240
        $region94: #{tpu_custom_call.1} parent=87 // pred_check_branch
          %733 = sbr.rel (%p731) target = $region96
        $region95: #{tpu_custom_call.1} parent=87 // pred_region
          %734 = dma.done %s727, 2048
        $region96: #{tpu_custom_call.1} parent=87 // pred_fallthru
          _
        %s735 = sand.u32 %s40, 1
        %s736 = scalar_lea.sflag [#allocation6], %s735
        %s737 = sand.u32 %s359, 1
        %s738 = smul.addr %s737, 128
        %s739 = scalar_lea.vmem [#allocation7], %s738
        // Predicated region
        $region97: #{tpu_custom_call.1} parent=87 // pred_check
          %p740 = pneg %p372
        $region98: #{tpu_custom_call.1} parent=87 // pred_check_branch
          %742 = sbr.rel (%p740) target = $region100
        $region99: #{tpu_custom_call.1} parent=87 // pred_region
          %743 = dma.done %s736, 2048
        $region100: #{tpu_custom_call.1} parent=87 // pred_fallthru
          _
        %s744 = sand.u32 %s40, 1
        %s745 = scalar_lea.sflag [#allocation9], %s744
        %s746 = sand.u32 %s385, 1
        %s747 = smul.addr %s746, 128
        %s748 = scalar_lea.vmem [#allocation8], %s747
        // Predicated region
        $region101: #{tpu_custom_call.1} parent=87 // pred_check
          %p749 = pneg %p398
        $region102: #{tpu_custom_call.1} parent=87 // pred_check_branch
          %751 = sbr.rel (%p749) target = $region104
        $region103: #{tpu_custom_call.1} parent=87 // pred_region
          %752 = dma.done %s745, 2048
        $region104: #{tpu_custom_call.1} parent=87 // pred_fallthru
          _
        %s753 = sand.u32 %s40, 1
        %s754 = scalar_lea.sflag [#allocation9], %s753
        %s755 = sand.u32 %s437, 1
        %s756 = smul.addr %s755, 128
        %s757 = scalar_lea.vmem [#allocation10], %s756
        // Predicated region
        $region105: #{tpu_custom_call.1} parent=87 // pred_check
          %p758 = pneg %p450
        $region106: #{tpu_custom_call.1} parent=87 // pred_check_branch
          %760 = sbr.rel (%p758) target = $region108
        $region107: #{tpu_custom_call.1} parent=87 // pred_region
          %761 = dma.done %s754, 2048
        $region108: #{tpu_custom_call.1} parent=87 // pred_fallthru
          _
        %p762 = pneg %p56
        %p763 = pneg %p53
        %p764 = scmp.lt.s32.totalorder %s40, 1
        %s765 = scalar_select %p764, %s40, 1
        %s766 = smul.addr %s765, 2
        %s767 = smul.addr %s766, 8
        %s768 = scalar_lea.vmem %s1, %s767
        %p769 = pneg %p82
        %p770 = pneg %p79
        %p771 = scmp.lt.s32.totalorder %s40, 1
        %s772 = scalar_select %p771, %s40, 1
        %s773 = scalar_lea.vmem %s2, %s772
        %p774 = pneg %p108
        %p775 = pneg %p105
        %p776 = scmp.lt.s32.totalorder %s40, 1
        %s777 = scalar_select %p776, %s40, 1
        %s778 = smul.addr %s777, 2
        %s779 = smul.addr %s778, 4
        %s780 = scalar_lea.vmem %s3, %s779
        %p781 = pneg %p134
        %p782 = pneg %p131
        %s783 = ssub.s32 1, %s40
        %p784 = scmp.lt.s32.totalorder %s783, 1
        %s785 = scalar_select %p784, %s783, 1
        %s786 = smul.addr %s785, 2
        %s787 = smul.addr %s786, 4
        %s788 = scalar_lea.vmem %s4, %s787
        %p789 = pneg %p162
        %p790 = pneg %p159
        %p791 = scmp.lt.s32.totalorder %s40, 1
        %s792 = scalar_select %p791, %s40, 1
        %s793 = smul.addr %s792, 2
        %s794 = smul.addr %s793, 8
        %s795 = scalar_lea.vmem %s5, %s794
        %p796 = pneg %p188
        %p797 = pneg %p185
        %s798 = sand.u32 %s201, 1
        %s799 = scalar_lea.sflag [#allocation3], %s798
        %s800 = sand.u32 %s201, 1
        %s801 = smul.addr %s800, 128
        %s802 = scalar_lea.vmem [#allocation2], %s801
        %p803 = pneg %p214
        %p804 = pneg %p211
        %s805 = sand.u32 %s40, 1
        %s806 = scalar_lea.sflag [#allocation6], %s805
        %s807 = sand.u32 %s227, 1
        %s808 = smul.addr %s807, 128
        %s809 = scalar_lea.vmem [#allocation5], %s808
        %p810 = pneg %p240
        %p811 = pneg %p237
        %p812 = scmp.lt.s32.totalorder %s40, 1
        %s813 = scalar_select %p812, %s40, 1
        %s814 = scalar_lea.vmem %s8, %s813
        %p815 = pneg %p266
        %p816 = pneg %p263
        %p817 = scmp.lt.s32.totalorder %s40, 1
        %s818 = scalar_select %p817, %s40, 1
        %s819 = smul.addr %s818, 4
        %s820 = scalar_lea.vmem %s9, %s819
        %p821 = pneg %p292
        %p822 = pneg %p289
        %s823 = ssub.s32 1, %s40
        %p824 = scmp.lt.s32.totalorder %s823, 1
        %s825 = scalar_select %p824, %s823, 1
        %s826 = smul.addr %s825, 4
        %s827 = scalar_lea.vmem %s10, %s826
        %p828 = pneg %p320
        %p829 = pneg %p317
        %p830 = scmp.lt.s32.totalorder %s40, 1
        %s831 = scalar_select %p830, %s40, 1
        %s832 = smul.addr %s831, 8
        %s833 = scalar_lea.vmem %s11, %s832
        %p834 = pneg %p346
        %p835 = pneg %p343
        %s836 = sand.u32 %s40, 1
        %s837 = scalar_lea.sflag [#allocation6], %s836
        %s838 = sand.u32 %s359, 1
        %s839 = smul.addr %s838, 128
        %s840 = scalar_lea.vmem [#allocation7], %s839
        %p841 = pneg %p372
        %p842 = pneg %p369
        %s843 = sand.u32 %s40, 1
        %s844 = scalar_lea.sflag [#allocation9], %s843
        %s845 = sand.u32 %s385, 1
        %s846 = smul.addr %s845, 128
        %s847 = scalar_lea.vmem [#allocation8], %s846
        %p848 = pneg %p398
        %p849 = pneg %p395
        %p850 = scmp.lt.s32.totalorder %s40, 1
        %s851 = scalar_select %p850, %s40, 1
        %s852 = scalar_lea.vmem %s14, %s851
        %p853 = pneg %p424
        %p854 = pneg %p421
        %s855 = sand.u32 %s40, 1
        %s856 = scalar_lea.sflag [#allocation9], %s855
        %s857 = sand.u32 %s437, 1
        %s858 = smul.addr %s857, 128
        %s859 = scalar_lea.vmem [#allocation10], %s858
        %p860 = pneg %p450
        %p861 = pneg %p447
        %p862 = scmp.lt.s32.totalorder %s40, 1
        %s863 = scalar_select %p862, %s40, 1
        %s864 = scalar_lea.vmem %s16, %s863
        %p865 = pneg %p476
        %p866 = pneg %p473
        %p867 = pneg %p502
        %p868 = pneg %p499
        %s869 = sand.u32 %s489, 1
        %s870 = scalar_lea.sflag [#allocation4], %s869
        %s871 = sand.u32 %s489, 1
        %s872 = smul.addr %s871, 8
        %s873 = scalar_lea.vmem [#allocation11], %s872
        %p874 = scmp.lt.s32.totalorder %s40, 1
        %s875 = scalar_select %p874, %s40, 1
        %s876 = smul.addr %s875, 2
        %s877 = smul.addr %s876, 8
        %s878 = scalar_lea.vmem %s1, %s877
        %p879 = scmp.lt.s32.totalorder %s40, 1
        %s880 = scalar_select %p879, %s40, 1
        %s881 = scalar_lea.vmem %s2, %s880
        %p882 = scmp.lt.s32.totalorder %s40, 1
        %s883 = scalar_select %p882, %s40, 1
        %s884 = smul.addr %s883, 2
        %s885 = smul.addr %s884, 4
        %s886 = scalar_lea.vmem %s3, %s885
        %s887 = ssub.s32 1, %s40
        %p888 = scmp.lt.s32.totalorder %s887, 1
        %s889 = scalar_select %p888, %s887, 1
        %s890 = smul.addr %s889, 2
        %s891 = smul.addr %s890, 4
        %s892 = scalar_lea.vmem %s4, %s891
        %s893 = ssub.s32 1, %s40
        %p894 = scmp.lt.s32.totalorder %s40, 1
        %s895 = scalar_select %p894, %s40, 1
        %s896 = smul.addr %s895, 2
        %s897 = smul.addr %s896, 8
        %s898 = scalar_lea.vmem %s5, %s897
        %p899 = scmp.lt.s32.totalorder %s40, 1
        %s900 = scalar_select %p899, %s40, 1
        %s901 = scalar_lea.vmem %s8, %s900
        %p902 = scmp.lt.s32.totalorder %s40, 1
        %s903 = scalar_select %p902, %s40, 1
        %s904 = smul.addr %s903, 4
        %s905 = scalar_lea.vmem %s9, %s904
        %s906 = ssub.s32 1, %s40
        %p907 = scmp.lt.s32.totalorder %s906, 1
        %s908 = scalar_select %p907, %s906, 1
        %s909 = smul.addr %s908, 4
        %s910 = scalar_lea.vmem %s10, %s909
        %s911 = ssub.s32 1, %s40
        %p912 = scmp.lt.s32.totalorder %s40, 1
        %s913 = scalar_select %p912, %s40, 1
        %s914 = smul.addr %s913, 8
        %s915 = scalar_lea.vmem %s11, %s914
        %p916 = scmp.lt.s32.totalorder %s40, 1
        %s917 = scalar_select %p916, %s40, 1
        %s918 = scalar_lea.vmem %s14, %s917
        %p919 = scmp.lt.s32.totalorder %s40, 1
        %s920 = scalar_select %p919, %s40, 1
        %s921 = scalar_lea.vmem %s16, %s920
        %v922 = vld [vmem:[%s0] sm:$0xff]
        %v923 = vld [vmem:[%s0 + $0x8] sm:$0xff]
        %v924 = vld [vmem:[%s0 + $0x10] sm:$0xff]
        %v925 = vld [vmem:[%s878] sm:$0xff]
        %v926 = vld [vmem:[%s878 + $0x8] sm:$0xff]
        %v927 = vld [vmem:[%s881] sm:$0x1]
        %v929 = vlaneseq
        %v930 = vshrl.u32 %v929, 7
        %v931 = vsub.s32 0, %v930
        %v932 = vrot.slane %v927, %v931
        %vm934 = vcmask 130048
        %v936 = vsel %vm934, %v922, 0
        %v939 = vsel %vm934, %v923, 0
        %v942 = vsel %vm934, %v924, 0
        %944 = vmatprep.subr.mxu0 0.0
        %945 = vmatpush1.msra.mxu0 %v925
        %946 = vmatprep.subr.mxu0 0.0
        %947 = vmatpush1.msra.mxu0 %v926
        %948 = vmatprep.subr.mxu0 0.0
        %949 = vmatpush1.msra.mxu0 0.0
        %950 = vmatprep.subr.mxu0 0.0
        %951 = vmatpush1.msra.mxu0 0.0
        %952 = vmatprep.subr.mxu0 0.0
        %953 = vmatpush1.msra.mxu0 0.0
        %954 = vmatprep.subr.mxu0 0.0
        %955 = vmatpush1.msra.mxu0 0.0
        %956 = vmatprep.subr.mxu0 0.0
        %957 = vmatpush1.msra.mxu0 0.0
        %958 = vmatprep.subr.mxu0 0.0
        %959 = vmatpush1.msra.mxu0 0.0
        %960 = vmatprep.subr.mxu0 0.0
        %961 = vmatpush1.msra.mxu0 0.0
        %962 = vmatprep.subr.mxu0 0.0
        %963 = vmatpush1.msra.mxu0 0.0
        %964 = vmatprep.subr.mxu0 0.0
        %965 = vmatpush1.msra.mxu0 0.0
        %966 = vmatprep.subr.mxu0 0.0
        %967 = vmatpush1.msra.mxu0 0.0
        %968 = vmatprep.subr.mxu0 0.0
        %969 = vmatpush1.msra.mxu0 0.0
        %970 = vmatprep.subr.mxu0 0.0
        %971 = vmatpush1.msra.mxu0 0.0
        %972 = vmatprep.subr.mxu0 0.0
        %973 = vmatpush1.msra.mxu0 0.0
        %974 = vmatprep.subr.mxu0 0.0
        %975 = vmatpush1.msra.mxu0 0.0
        %976 = vmatprep.subr.mxu0 0.0
        %977 = vmatpush1.msra.mxu0 0.0
        %978 = vmatprep.subr.mxu0 0.0
        %979 = vmatpush1.msra.mxu0 0.0
        %980 = vmatprep.subr.mxu0 0.0
        %981 = vmatpush1.msra.mxu0 0.0
        %982 = vmatprep.subr.mxu0 0.0
        %983 = vmatpush1.msra.mxu0 0.0
        %984 = vmatprep.subr.mxu0 0.0
        %985 = vmatpush1.msra.mxu0 0.0
        %986 = vmatprep.subr.mxu0 0.0
        %987 = vmatpush1.msra.mxu0 0.0
        %988 = vmatprep.subr.mxu0 0.0
        %989 = vmatpush1.msra.mxu0 0.0
        %990 = vmatprep.subr.mxu0 0.0
        %991 = vmatpush1.msra.mxu0 0.0
        %992 = vmatprep.subr.mxu0 0.0
        %993 = vmatpush1.msra.mxu0 0.0
        %994 = vmatprep.subr.mxu0 0.0
        %995 = vmatpush1.msra.mxu0 0.0
        %996 = vmatprep.subr.mxu0 0.0
        %997 = vmatpush1.msra.mxu0 0.0
        %998 = vmatprep.subr.mxu0 0.0
        %999 = vmatpush1.msra.mxu0 0.0
        %1000 = vmatprep.subr.mxu0 0.0
        %1001 = vmatpush1.msra.mxu0 0.0
        %1002 = vmatprep.subr.mxu0 0.0
        %1003 = vmatpush1.msra.mxu0 0.0
        %1004 = vmatprep.subr.mxu0 0.0
        %1005 = vmatpush1.msra.mxu0 0.0
        %1006 = vmatprep.subr.mxu0 0.0
        %1007 = vmatpush1.msra.mxu0 0.0
        %1008 = vmatprep.mubr.f32.mxu0 0.0
        %1009 = vmatmul.mubr.f32.gmra.mrb[0].mxu0 %v936
        %v1010 = vpop.f32.mrb[0].mxu0
        %v1011 = vadd.f32 %v932, %v1010
        %v1012 = vpop.f32.mrb[0].mxu0
        %1013 = vmatprep.mubr.f32.mxu0 0.0
        %1014 = vmatmul.mubr.f32.gmra.mrb[0].mxu0 %v939
        %v1015 = vpop.f32.mrb[0].mxu0
        %v1016 = vadd.f32 %v932, %v1015
        %v1017 = vpop.f32.mrb[0].mxu0
        %1018 = vmatprep.mubr.f32.mxu0 0.0
        %1019 = vmatmul.mubr.f32.gmra.mrb[0].mxu0 %v942
        %v1020 = vpop.f32.mrb[0].mxu0
        %v1021 = vadd.f32 %v932, %v1020
        %v1022 = vpop.f32.mrb[0].mxu0
        %1023 = vdwg.mxu0
        %v1024 = vld [vmem:[%s886] sm:$0xf]
        %v1025 = vld [vmem:[%s886 + $0x4] sm:$0xf]
        %v1026 = vld [vmem:[%s892] sm:$0xf]
        %v1027 = vld [vmem:[%s892 + $0x4] sm:$0xf]
        %v1028 = vld [vmem:[%s898] sm:$0xff]
        %v1029 = vld [vmem:[%s898 + $0x8] sm:$0xff]
        %v1030 = vld [vmem:[%s721] sm:$0xff]
        %v1031 = vld [vmem:[%s721 + $0x8] sm:$0xff]
        %v1032 = vld [vmem:[%s721 + $0x10] sm:$0xff]
        %v1033 = vld [vmem:[%s721 + $0x18] sm:$0xff]
        %v1034 = vld [vmem:[%s721 + $0x20] sm:$0xff]
        %v1035 = vld [vmem:[%s721 + $0x28] sm:$0xff]
        %v1036 = vld [vmem:[%s721 + $0x30] sm:$0xff]
        %v1037 = vld [vmem:[%s721 + $0x38] sm:$0xff]
        %v1038 = vld [vmem:[%s721 + $0x40] sm:$0xff]
        %v1039 = vld [vmem:[%s721 + $0x48] sm:$0xff]
        %v1040 = vld [vmem:[%s721 + $0x50] sm:$0xff]
        %v1041 = vld [vmem:[%s721 + $0x58] sm:$0xff]
        %v1042 = vld [vmem:[%s721 + $0x60] sm:$0xff]
        %v1043 = vld [vmem:[%s721 + $0x68] sm:$0xff]
        %v1044 = vld [vmem:[%s721 + $0x70] sm:$0xff]
        %v1045 = vld [vmem:[%s721 + $0x78] sm:$0xff]
        %v1046 = vld [vmem:[%s730] sm:$0xff]
        %v1047 = vld [vmem:[%s730 + $0x8] sm:$0xff]
        %v1048 = vld [vmem:[%s730 + $0x10] sm:$0xff]
        %v1049 = vld [vmem:[%s730 + $0x18] sm:$0xff]
        %v1050 = vld [vmem:[%s730 + $0x20] sm:$0xff]
        %v1051 = vld [vmem:[%s730 + $0x28] sm:$0xff]
        %v1052 = vld [vmem:[%s730 + $0x30] sm:$0xff]
        %v1053 = vld [vmem:[%s730 + $0x38] sm:$0xff]
        %v1054 = vld [vmem:[%s730 + $0x40] sm:$0xff]
        %v1055 = vld [vmem:[%s730 + $0x48] sm:$0xff]
        %v1056 = vld [vmem:[%s730 + $0x50] sm:$0xff]
        %v1057 = vld [vmem:[%s730 + $0x58] sm:$0xff]
        %v1058 = vld [vmem:[%s730 + $0x60] sm:$0xff]
        %v1059 = vld [vmem:[%s730 + $0x68] sm:$0xff]
        %v1060 = vld [vmem:[%s730 + $0x70] sm:$0xff]
        %v1061 = vld [vmem:[%s730 + $0x78] sm:$0xff]
        %v1062 = vld [vmem:[%s901] sm:$0x1]
        %1063 = vmatprep.subr.mxu0 0.0
        %1064 = vmatpush1.msra.mxu0 %v1030
        %1065 = vmatprep.subr.mxu0 0.0
        %1066 = vmatpush1.msra.mxu0 %v1031
        %1067 = vmatprep.subr.mxu0 0.0
        %1068 = vmatpush1.msra.mxu0 %v1032
        %1069 = vmatprep.subr.mxu0 0.0
        %1070 = vmatpush1.msra.mxu0 %v1033
        %1071 = vmatprep.subr.mxu0 0.0
        %1072 = vmatpush1.msra.mxu0 %v1034
        %1073 = vmatprep.subr.mxu0 0.0
        %1074 = vmatpush1.msra.mxu0 %v1035
        %1075 = vmatprep.subr.mxu0 0.0
        %1076 = vmatpush1.msra.mxu0 %v1036
        %1077 = vmatprep.subr.mxu0 0.0
        %1078 = vmatpush1.msra.mxu0 %v1037
        %1079 = vmatprep.subr.mxu0 0.0
        %1080 = vmatpush1.msra.mxu0 %v1038
        %1081 = vmatprep.subr.mxu0 0.0
        %1082 = vmatpush1.msra.mxu0 %v1039
        %1083 = vmatprep.subr.mxu0 0.0
        %1084 = vmatpush1.msra.mxu0 %v1040
        %1085 = vmatprep.subr.mxu0 0.0
        %1086 = vmatpush1.msra.mxu0 %v1041
        %1087 = vmatprep.subr.mxu0 0.0
        %1088 = vmatpush1.msra.mxu0 %v1042
        %1089 = vmatprep.subr.mxu0 0.0
        %1090 = vmatpush1.msra.mxu0 %v1043
        %1091 = vmatprep.subr.mxu0 0.0
        %1092 = vmatpush1.msra.mxu0 %v1044
        %1093 = vmatprep.subr.mxu0 0.0
        %1094 = vmatpush1.msra.mxu0 %v1045
        %1095 = vmatprep.subr.mxu0 0.0
        %1096 = vmatpush1.msra.mxu0 0.0
        %1097 = vmatprep.subr.mxu0 0.0
        %1098 = vmatpush1.msra.mxu0 0.0
        %1099 = vmatprep.subr.mxu0 0.0
        %1100 = vmatpush1.msra.mxu0 0.0
        %1101 = vmatprep.subr.mxu0 0.0
        %1102 = vmatpush1.msra.mxu0 0.0
        %1103 = vmatprep.subr.mxu0 0.0
        %1104 = vmatpush1.msra.mxu0 0.0
        %1105 = vmatprep.subr.mxu0 0.0
        %1106 = vmatpush1.msra.mxu0 0.0
        %1107 = vmatprep.subr.mxu0 0.0
        %1108 = vmatpush1.msra.mxu0 0.0
        %1109 = vmatprep.subr.mxu0 0.0
        %1110 = vmatpush1.msra.mxu0 0.0
        %1111 = vmatprep.subr.mxu0 0.0
        %1112 = vmatpush1.msra.mxu0 0.0
        %1113 = vmatprep.subr.mxu0 0.0
        %1114 = vmatpush1.msra.mxu0 0.0
        %1115 = vmatprep.subr.mxu0 0.0
        %1116 = vmatpush1.msra.mxu0 0.0
        %1117 = vmatprep.subr.mxu0 0.0
        %1118 = vmatpush1.msra.mxu0 0.0
        %1119 = vmatprep.subr.mxu0 0.0
        %1120 = vmatpush1.msra.mxu0 0.0
        %1121 = vmatprep.subr.mxu0 0.0
        %1122 = vmatpush1.msra.mxu0 0.0
        %1123 = vmatprep.subr.mxu0 0.0
        %1124 = vmatpush1.msra.mxu0 0.0
        %1125 = vmatprep.subr.mxu0 0.0
        %1126 = vmatpush1.msra.mxu0 0.0
        %1127 = vmatprep.mubr.f32.mxu0 0.0
        %1128 = vmatmul.mubr.f32.gmra.mrb[0].mxu0 %v1011
        %v1129 = vpop.f32.mrb[0].mxu0
        %v1130 = vadd.f32 0.0, %v1129
        %v1131 = vpop.f32.mrb[0].mxu0
        %1132 = vmatprep.mubr.f32.mxu0 0.0
        %1133 = vmatmul.mubr.f32.gmra.mrb[0].mxu0 %v1016
        %v1134 = vpop.f32.mrb[0].mxu0
        %v1135 = vadd.f32 0.0, %v1134
        %v1136 = vpop.f32.mrb[0].mxu0
        %1137 = vmatprep.mubr.f32.mxu0 0.0
        %1138 = vmatmul.mubr.f32.gmra.mrb[0].mxu0 %v1021
        %v1139 = vpop.f32.mrb[0].mxu0
        %v1140 = vadd.f32 0.0, %v1139
        %v1141 = vpop.f32.mrb[0].mxu0
        %1142 = vdwg.mxu0
        %v1143 = vxor.u32 %v1130, 2147483648
        %v1144 = vxor.u32 %v1135, 2147483648
        %v1145 = vmul.f32 %v1143, 1.442695
        %v1146 = vpow.pop %v1145
        %v1147 = vmul.f32 %v1144, 1.442695
        %v1148 = vpow.pop %v1147
        %v1149 = vadd.f32 %v1146, 1.0
        %v1150 = vadd.f32 %v1148, 1.0
        %v1151 = vrcp.pop %v1149
        %v1152 = vmul.f32 1.0, %v1151
        %v1153 = vrcp.pop %v1150
        %v1154 = vmul.f32 1.0, %v1153
        %v1155 = vsub.f32 1.0, %v1152
        %v1156 = vsub.f32 1.0, %v1154
        %v1157 = vunpack.c.l.bf16 %v1024
        %v1158 = vunpack.c.l.bf16 %v1025
        %v1159 = vunpack.c.l.bf16 %v1026
        %v1160 = vunpack.c.l.bf16 %v1027
        %1164 = vrot.lane.b32.xlu0 %v1130, 127
        %v1165 = vpop.permute.xlu0 %1164
        %1166 = vrot.lane.b32.xlu0 %v1135, 127
        %v1167 = vpop.permute.xlu0 %1166
        %1168 = vrot.lane.b32.xlu0 %v1140, 127
        %v1169 = vpop.permute.xlu0 %1168
        %1173 = vxpose.xlu0.b32.start [1/16] %v1165, 128
        %1174 = vxpose.xlu0.b32.cont [2/16] %v1167, 128
        %1175 = vxpose.xlu0.b32.cont [3/16] %v1169, 128
        %1176 = vxpose.xlu0.b32.cont [4/16] 0.0, 128
        %1177 = vxpose.xlu0.b32.cont [5/16] 0.0, 128
        %1178 = vxpose.xlu0.b32.cont [6/16] 0.0, 128
        %1179 = vxpose.xlu0.b32.cont [7/16] 0.0, 128
        %1180 = vxpose.xlu0.b32.cont [8/16] 0.0, 128
        %1181 = vxpose.xlu0.b32.cont [9/16] 0.0, 128
        %1182 = vxpose.xlu0.b32.cont [10/16] 0.0, 128
        %1183 = vxpose.xlu0.b32.cont [11/16] 0.0, 128
        %1184 = vxpose.xlu0.b32.cont [12/16] 0.0, 128
        %1185 = vxpose.xlu0.b32.cont [13/16] 0.0, 128
        %1186 = vxpose.xlu0.b32.cont [14/16] 0.0, 128
        %1187 = vxpose.xlu0.b32.cont [15/16] 0.0, 128
        %1188 = vxpose.xlu0.b32.end [16/16] 0.0, 128
        %v1189 = vpop.trf.xlu0
        %v1190 = vpop.trf.xlu0
        %v1191 = vpop.trf.xlu0
        %v1192 = vpop.trf.xlu0
        %v1193 = vpop.trf.xlu0
        %v1194 = vpop.trf.xlu0
        %v1195 = vpop.trf.xlu0
        %v1196 = vpop.trf.xlu0
        %v1197 = vpop.trf.xlu0
        %v1198 = vpop.trf.xlu0
        %v1199 = vpop.trf.xlu0
        %v1200 = vpop.trf.xlu0
        %v1201 = vpop.trf.xlu0
        %v1202 = vpop.trf.xlu0
        %v1203 = vpop.trf.xlu0
        %v1204 = vpop.trf.xlu0
        %1205 = vset.pattern.permute.xlu0 2
        %1206 = vperm.xlu0 %1205, %v1130
        %v1207 = vpop.permute.xlu0 %1206
        %1209 = vset.pattern.permute.xlu0 2
        %1210 = vperm.xlu0 %1209, %v1135
        %v1211 = vpop.permute.xlu0 %1210
        %v1213 = vlaneseq
        %v1214 = vshrl.u32 %v1213, 7
        %v1215 = vsub.s32 0, %v1214
        %v1216 = vrot.slane %v1189, %v1215
        %v1217 = vadd.f32 %v1207, %v1216
        %v1218 = vadd.f32 %v1211, %v1216
        %v1219 = vxor.u32 %v1217, 2147483648
        %v1220 = vxor.u32 %v1218, 2147483648
        %v1221 = vmul.f32 %v1219, 1.442695
        %v1222 = vpow.pop %v1221
        %v1223 = vmul.f32 %v1220, 1.442695
        %v1224 = vpow.pop %v1223
        %v1225 = vadd.f32 %v1222, 1.0
        %v1226 = vadd.f32 %v1224, 1.0
        %v1227 = vrcp.pop %v1225
        %v1228 = vmul.f32 1.0, %v1227
        %v1229 = vrcp.pop %v1226
        %v1230 = vmul.f32 1.0, %v1229
        %v1231 = vmul.f32 %v1157, %v1228
        %v1232 = vmul.f32 %v1158, %v1230
        %v1233 = vsub.f32 %v1157, %v1231
        %v1234 = vsub.f32 %v1158, %v1232
        %1235 = vrot.lane.b32.xlu0 %v1130, 125
        %v1236 = vpop.permute.xlu0 %1235
        %1237 = vrot.lane.b32.xlu0 %v1135, 125
        %v1238 = vpop.permute.xlu0 %1237
        %1239 = vrot.lane.b32.xlu0 %v1140, 125
        %v1240 = vpop.permute.xlu0 %1239
        %1244 = vxpose.xlu0.b32.start [1/16] %v1236, 128
        %1245 = vxpose.xlu0.b32.cont [2/16] %v1238, 128
        %1246 = vxpose.xlu0.b32.cont [3/16] %v1240, 128
        %1247 = vxpose.xlu0.b32.cont [4/16] 0.0, 128
        %1248 = vxpose.xlu0.b32.cont [5/16] 0.0, 128
        %1249 = vxpose.xlu0.b32.cont [6/16] 0.0, 128
        %1250 = vxpose.xlu0.b32.cont [7/16] 0.0, 128
        %1251 = vxpose.xlu0.b32.cont [8/16] 0.0, 128
        %1252 = vxpose.xlu0.b32.cont [9/16] 0.0, 128
        %1253 = vxpose.xlu0.b32.cont [10/16] 0.0, 128
        %1254 = vxpose.xlu0.b32.cont [11/16] 0.0, 128
        %1255 = vxpose.xlu0.b32.cont [12/16] 0.0, 128
        %1256 = vxpose.xlu0.b32.cont [13/16] 0.0, 128
        %1257 = vxpose.xlu0.b32.cont [14/16] 0.0, 128
        %1258 = vxpose.xlu0.b32.cont [15/16] 0.0, 128
        %1259 = vxpose.xlu0.b32.end [16/16] 0.0, 128
        %v1260 = vpop.trf.xlu0
        %v1261 = vpop.trf.xlu0
        %v1262 = vpop.trf.xlu0
        %v1263 = vpop.trf.xlu0
        %v1264 = vpop.trf.xlu0
        %v1265 = vpop.trf.xlu0
        %v1266 = vpop.trf.xlu0
        %v1267 = vpop.trf.xlu0
        %v1268 = vpop.trf.xlu0
        %v1269 = vpop.trf.xlu0
        %v1270 = vpop.trf.xlu0
        %v1271 = vpop.trf.xlu0
        %v1272 = vpop.trf.xlu0
        %v1273 = vpop.trf.xlu0
        %v1274 = vpop.trf.xlu0
        %v1275 = vpop.trf.xlu0
        %1276 = vset.pattern.permute.xlu0 4
        %1277 = vperm.xlu0 %1276, %v1130
        %v1278 = vpop.permute.xlu0 %1277
        %1280 = vset.pattern.permute.xlu0 4
        %1281 = vperm.xlu0 %1280, %v1135
        %v1282 = vpop.permute.xlu0 %1281
        %v1284 = vlaneseq
        %v1285 = vshrl.u32 %v1284, 7
        %v1286 = vsub.s32 0, %v1285
        %v1287 = vrot.slane %v1260, %v1286
        %v1288 = vadd.f32 %v1278, %v1287
        %v1289 = vadd.f32 %v1282, %v1287
        %v1290 = vxor.u32 %v1288, 2147483648
        %v1291 = vxor.u32 %v1289, 2147483648
        %v1292 = vmul.f32 %v1290, 1.442695
        %v1293 = vpow.pop %v1292
        %v1294 = vmul.f32 %v1291, 1.442695
        %v1295 = vpow.pop %v1294
        %v1296 = vadd.f32 %v1293, 1.0
        %v1297 = vadd.f32 %v1295, 1.0
        %v1298 = vrcp.pop %v1296
        %v1299 = vmul.f32 1.0, %v1298
        %v1300 = vrcp.pop %v1297
        %v1301 = vmul.f32 1.0, %v1300
        %v1302 = vmul.f32 %v1159, %v1299
        %v1303 = vmul.f32 %v1160, %v1301
        %vm1304 = vcmask 195584
        %v1306 = vsel %vm1304, %v1231, 0
        %v1309 = vsel %vm1304, %v1232, 0
        %v1312 = vsel %vm1304, %v1233, 0
        %v1315 = vsel %vm1304, %v1234, 0
        %v1318 = vsel %vm1304, %v1302, 0
        %v1321 = vsel %vm1304, %v1303, 0
        %1323 = vmatprep.subr.mxu0 0.0
        %1324 = vmatpush1.msra.mxu0 %v1011
        %1325 = vmatprep.subr.mxu0 0.0
        %1326 = vmatpush1.msra.mxu0 %v1016
        %1327 = vmatprep.subr.mxu0 0.0
        %1328 = vmatpush1.msra.mxu0 %v1021
        %1329 = vmatprep.subr.mxu0 0.0
        %1330 = vmatpush1.msra.mxu0 0.0
        %1331 = vmatprep.subr.mxu0 0.0
        %1332 = vmatpush1.msra.mxu0 0.0
        %1333 = vmatprep.subr.mxu0 0.0
        %1334 = vmatpush1.msra.mxu0 0.0
        %1335 = vmatprep.subr.mxu0 0.0
        %1336 = vmatpush1.msra.mxu0 0.0
        %1337 = vmatprep.subr.mxu0 0.0
        %1338 = vmatpush1.msra.mxu0 0.0
        %1339 = vmatprep.subr.mxu0 0.0
        %1340 = vmatpush1.msra.mxu0 0.0
        %1341 = vmatprep.subr.mxu0 0.0
        %1342 = vmatpush1.msra.mxu0 0.0
        %1343 = vmatprep.subr.mxu0 0.0
        %1344 = vmatpush1.msra.mxu0 0.0
        %1345 = vmatprep.subr.mxu0 0.0
        %1346 = vmatpush1.msra.mxu0 0.0
        %1347 = vmatprep.subr.mxu0 0.0
        %1348 = vmatpush1.msra.mxu0 0.0
        %1349 = vmatprep.subr.mxu0 0.0
        %1350 = vmatpush1.msra.mxu0 0.0
        %1351 = vmatprep.subr.mxu0 0.0
        %1352 = vmatpush1.msra.mxu0 0.0
        %1353 = vmatprep.subr.mxu0 0.0
        %1354 = vmatpush1.msra.mxu0 0.0
        %1355 = vmatprep.subr.mxu0 0.0
        %1356 = vmatpush1.msra.mxu0 0.0
        %1357 = vmatprep.subr.mxu0 0.0
        %1358 = vmatpush1.msra.mxu0 0.0
        %1359 = vmatprep.subr.mxu0 0.0
        %1360 = vmatpush1.msra.mxu0 0.0
        %1361 = vmatprep.subr.mxu0 0.0
        %1362 = vmatpush1.msra.mxu0 0.0
        %1363 = vmatprep.subr.mxu0 0.0
        %1364 = vmatpush1.msra.mxu0 0.0
        %1365 = vmatprep.subr.mxu0 0.0
        %1366 = vmatpush1.msra.mxu0 0.0
        %1367 = vmatprep.subr.mxu0 0.0
        %1368 = vmatpush1.msra.mxu0 0.0
        %1369 = vmatprep.subr.mxu0 0.0
        %1370 = vmatpush1.msra.mxu0 0.0
        %1371 = vmatprep.subr.mxu0 0.0
        %1372 = vmatpush1.msra.mxu0 0.0
        %1373 = vmatprep.subr.mxu0 0.0
        %1374 = vmatpush1.msra.mxu0 0.0
        %1375 = vmatprep.subr.mxu0 0.0
        %1376 = vmatpush1.msra.mxu0 0.0
        %1377 = vmatprep.subr.mxu0 0.0
        %1378 = vmatpush1.msra.mxu0 0.0
        %1379 = vmatprep.subr.mxu0 0.0
        %1380 = vmatpush1.msra.mxu0 0.0
        %1381 = vmatprep.subr.mxu0 0.0
        %1382 = vmatpush1.msra.mxu0 0.0
        %1383 = vmatprep.subr.mxu0 0.0
        %1384 = vmatpush1.msra.mxu0 0.0
        %1385 = vmatprep.subr.mxu0 0.0
        %1386 = vmatpush1.msra.mxu0 0.0
        %1387 = vmatprep.mubr.f32.mxu0 0.0
        %1388 = vmatmul.mubr.f32.gmra.mrb[0].mxu0 %v1306
        %v1389 = vpop.f32.mrb[0].mxu0
        %v1390 = vadd.f32 0.0, %v1389
        %v1391 = vpop.f32.mrb[0].mxu0
        %1392 = vmatprep.mubr.f32.mxu0 0.0
        %1393 = vmatmul.mubr.f32.gmra.mrb[0].mxu0 %v1309
        %v1394 = vpop.f32.mrb[0].mxu0
        %v1395 = vadd.f32 0.0, %v1394
        %v1396 = vpop.f32.mrb[0].mxu0
        %1397 = vmatprep.mubr.f32.mxu0 0.0
        %1398 = vmatmul.mubr.f32.gmra.mrb[0].mxu0 %v1312
        %v1399 = vpop.f32.mrb[0].mxu0
        %v1400 = vadd.f32 0.0, %v1399
        %v1401 = vpop.f32.mrb[0].mxu0
        %1402 = vmatprep.mubr.f32.mxu0 0.0
        %1403 = vmatmul.mubr.f32.gmra.mrb[0].mxu0 %v1315
        %v1404 = vpop.f32.mrb[0].mxu0
        %v1405 = vadd.f32 0.0, %v1404
        %v1406 = vpop.f32.mrb[0].mxu0
        %1407 = vmatprep.mubr.f32.mxu0 0.0
        %1408 = vmatmul.mubr.f32.gmra.mrb[0].mxu0 %v1318
        %v1409 = vpop.f32.mrb[0].mxu0
        %v1410 = vadd.f32 0.0, %v1409
        %v1411 = vpop.f32.mrb[0].mxu0
        %1412 = vmatprep.mubr.f32.mxu0 0.0
        %1413 = vmatmul.mubr.f32.gmra.mrb[0].mxu0 %v1321
        %v1414 = vpop.f32.mrb[0].mxu0
        %v1415 = vadd.f32 0.0, %v1414
        %v1416 = vpop.f32.mrb[0].mxu0
        %1417 = vdwg.mxu0
        %v1418 = vsel %vm1304, %v1231, 0.0
        %1419 = vadd.xlane.f32.xlu0 %v1418
        %v1420 = vpop.xlane.xlu0 %1419
        %v1421 = vsel %vm1304, %v1232, 0.0
        %1422 = vadd.xlane.f32.xlu0 %v1421
        %v1423 = vpop.xlane.xlu0 %1422
        %v1425 = vlaneseq
        %v1426 = vshrl.u32 %v1425, 7
        %v1427 = vsub.s32 0, %v1426
        %v1428 = vrot.slane %v1062, %v1427
        %v1430 = vmul.f32 %v1420, %v1428
        %v1431 = vmul.f32 %v1423, %v1428
        %1432 = vmatprep.subr.mxu0 0.0
        %1433 = vmatpush1.msra.mxu0 %v1046
        %1434 = vmatprep.subr.mxu0 0.0
        %1435 = vmatpush1.msra.mxu0 %v1047
        %1436 = vmatprep.subr.mxu0 0.0
        %1437 = vmatpush1.msra.mxu0 %v1048
        %1438 = vmatprep.subr.mxu0 0.0
        %1439 = vmatpush1.msra.mxu0 %v1049
        %1440 = vmatprep.subr.mxu0 0.0
        %1441 = vmatpush1.msra.mxu0 %v1050
        %1442 = vmatprep.subr.mxu0 0.0
        %1443 = vmatpush1.msra.mxu0 %v1051
        %1444 = vmatprep.subr.mxu0 0.0
        %1445 = vmatpush1.msra.mxu0 %v1052
        %1446 = vmatprep.subr.mxu0 0.0
        %1447 = vmatpush1.msra.mxu0 %v1053
        %1448 = vmatprep.subr.mxu0 0.0
        %1449 = vmatpush1.msra.mxu0 %v1054
        %1450 = vmatprep.subr.mxu0 0.0
        %1451 = vmatpush1.msra.mxu0 %v1055
        %1452 = vmatprep.subr.mxu0 0.0
        %1453 = vmatpush1.msra.mxu0 %v1056
        %1454 = vmatprep.subr.mxu0 0.0
        %1455 = vmatpush1.msra.mxu0 %v1057
        %1456 = vmatprep.subr.mxu0 0.0
        %1457 = vmatpush1.msra.mxu0 %v1058
        %1458 = vmatprep.subr.mxu0 0.0
        %1459 = vmatpush1.msra.mxu0 %v1059
        %1460 = vmatprep.subr.mxu0 0.0
        %1461 = vmatpush1.msra.mxu0 %v1060
        %1462 = vmatprep.subr.mxu0 0.0
        %1463 = vmatpush1.msra.mxu0 %v1061
        %1464 = vmatprep.subr.mxu0 0.0
        %1465 = vmatpush1.msra.mxu0 0.0
        %1466 = vmatprep.subr.mxu0 0.0
        %1467 = vmatpush1.msra.mxu0 0.0
        %1468 = vmatprep.subr.mxu0 0.0
        %1469 = vmatpush1.msra.mxu0 0.0
        %1470 = vmatprep.subr.mxu0 0.0
        %1471 = vmatpush1.msra.mxu0 0.0
        %1472 = vmatprep.subr.mxu0 0.0
        %1473 = vmatpush1.msra.mxu0 0.0
        %1474 = vmatprep.subr.mxu0 0.0
        %1475 = vmatpush1.msra.mxu0 0.0
        %1476 = vmatprep.subr.mxu0 0.0
        %1477 = vmatpush1.msra.mxu0 0.0
        %1478 = vmatprep.subr.mxu0 0.0
        %1479 = vmatpush1.msra.mxu0 0.0
        %1480 = vmatprep.subr.mxu0 0.0
        %1481 = vmatpush1.msra.mxu0 0.0
        %1482 = vmatprep.subr.mxu0 0.0
        %1483 = vmatpush1.msra.mxu0 0.0
        %1484 = vmatprep.subr.mxu0 0.0
        %1485 = vmatpush1.msra.mxu0 0.0
        %1486 = vmatprep.subr.mxu0 0.0
        %1487 = vmatpush1.msra.mxu0 0.0
        %1488 = vmatprep.subr.mxu0 0.0
        %1489 = vmatpush1.msra.mxu0 0.0
        %1490 = vmatprep.subr.mxu0 0.0
        %1491 = vmatpush1.msra.mxu0 0.0
        %1492 = vmatprep.subr.mxu0 0.0
        %1493 = vmatpush1.msra.mxu0 0.0
        %1494 = vmatprep.subr.mxu0 0.0
        %1495 = vmatpush1.msra.mxu0 0.0
        %1496 = vmatprep.mubr.f32.mxu0 0.0
        %1497 = vmatmul.mubr.f32.gmra.mrb[0].mxu0 %v1390
        %v1498 = vpop.f32.mrb[0].mxu0
        %v1499 = vadd.f32 %v1430, %v1498
        %v1500 = vpop.f32.mrb[0].mxu0
        %1501 = vmatprep.mubr.f32.mxu0 0.0
        %1502 = vmatmul.mubr.f32.gmra.mrb[0].mxu0 %v1395
        %v1503 = vpop.f32.mrb[0].mxu0
        %v1504 = vadd.f32 %v1431, %v1503
        %v1505 = vpop.f32.mrb[0].mxu0
        %1506 = vdwg.mxu0
        %1508 = vset.pattern.permute.xlu0 0
        %1509 = vperm.xlu0 %1508, %v1028
        %v1510 = vpop.permute.xlu0 %1509
        %1513 = vset.pattern.permute.xlu0 0
        %1514 = vperm.xlu0 %1513, %v1029
        %v1515 = vpop.permute.xlu0 %1514
        %v1517 = vmul.f32 %v1499, %v1510
        %v1518 = vmul.f32 %v1504, %v1515
        %v1519 = vmax.f32 %v1517, 0.0
        %v1520 = vmax.f32 %v1518, 0.0
        %1522 = vset.pattern.permute.xlu0 0
        %1523 = vperm.xlu0 %1522, %v1152
        %v1524 = vpop.permute.xlu0 %1523
        %1527 = vset.pattern.permute.xlu0 0
        %1528 = vperm.xlu0 %1527, %v1154
        %v1529 = vpop.permute.xlu0 %1528
        %v1531 = vmul.f32 %v1524, %v1011
        %v1532 = vmul.f32 %v1529, %v1016
        %v1533 = vadd.f32 %v1519, %v1531
        %v1534 = vadd.f32 %v1520, %v1532
        %v1535 = vmul.f32 %v1400, %v1410
        %v1536 = vmul.f32 %v1405, %v1415
        %v1537 = vmax.f32 %v1535, 0.0
        %v1538 = vmax.f32 %v1536, 0.0
        %1540 = vset.pattern.permute.xlu0 0
        %1541 = vperm.xlu0 %1540, %v1155
        %v1542 = vpop.permute.xlu0 %1541
        %1545 = vset.pattern.permute.xlu0 0
        %1546 = vperm.xlu0 %1545, %v1156
        %v1547 = vpop.permute.xlu0 %1546
        %v1549 = vmul.f32 %v1542, %v1011
        %v1550 = vmul.f32 %v1547, %v1016
        %v1551 = vadd.f32 %v1537, %v1549
        %v1552 = vadd.f32 %v1538, %v1550
        %v1553 = vadd.f32 %v1533, %v1551
        %v1554 = vadd.f32 %v1534, %v1552
        %v1555 = vmul.f32 %v1553, 0.5
        %v1556 = vmul.f32 %v1554, 0.5
        %v1557 = vld [vmem:[%s905] sm:$0xf]
        %v1558 = vld [vmem:[%s910] sm:$0xf]
        %v1559 = vld [vmem:[%s915] sm:$0xff]
        %v1560 = vld [vmem:[%s739] sm:$0xff]
        %v1561 = vld [vmem:[%s739 + $0x8] sm:$0xff]
        %v1562 = vld [vmem:[%s739 + $0x10] sm:$0xff]
        %v1563 = vld [vmem:[%s739 + $0x18] sm:$0xff]
        %v1564 = vld [vmem:[%s739 + $0x20] sm:$0xff]
        %v1565 = vld [vmem:[%s739 + $0x28] sm:$0xff]
        %v1566 = vld [vmem:[%s739 + $0x30] sm:$0xff]
        %v1567 = vld [vmem:[%s739 + $0x38] sm:$0xff]
        %v1568 = vld [vmem:[%s739 + $0x40] sm:$0xff]
        %v1569 = vld [vmem:[%s739 + $0x48] sm:$0xff]
        %v1570 = vld [vmem:[%s739 + $0x50] sm:$0xff]
        %v1571 = vld [vmem:[%s739 + $0x58] sm:$0xff]
        %v1572 = vld [vmem:[%s739 + $0x60] sm:$0xff]
        %v1573 = vld [vmem:[%s739 + $0x68] sm:$0xff]
        %v1574 = vld [vmem:[%s739 + $0x70] sm:$0xff]
        %v1575 = vld [vmem:[%s739 + $0x78] sm:$0xff]
        %v1576 = vld [vmem:[%s748] sm:$0xff]
        %v1577 = vld [vmem:[%s748 + $0x8] sm:$0xff]
        %v1578 = vld [vmem:[%s748 + $0x10] sm:$0xff]
        %v1579 = vld [vmem:[%s748 + $0x18] sm:$0xff]
        %v1580 = vld [vmem:[%s748 + $0x20] sm:$0xff]
        %v1581 = vld [vmem:[%s748 + $0x28] sm:$0xff]
        %v1582 = vld [vmem:[%s748 + $0x30] sm:$0xff]
        %v1583 = vld [vmem:[%s748 + $0x38] sm:$0xff]
        %v1584 = vld [vmem:[%s748 + $0x40] sm:$0xff]
        %v1585 = vld [vmem:[%s748 + $0x48] sm:$0xff]
        %v1586 = vld [vmem:[%s748 + $0x50] sm:$0xff]
        %v1587 = vld [vmem:[%s748 + $0x58] sm:$0xff]
        %v1588 = vld [vmem:[%s748 + $0x60] sm:$0xff]
        %v1589 = vld [vmem:[%s748 + $0x68] sm:$0xff]
        %v1590 = vld [vmem:[%s748 + $0x70] sm:$0xff]
        %v1591 = vld [vmem:[%s748 + $0x78] sm:$0xff]
        %v1592 = vld [vmem:[%s918] sm:$0x1]
        %1593 = vmatprep.subr.mxu0 0.0
        %1594 = vmatpush1.msra.mxu0 %v1560
        %1595 = vmatprep.subr.mxu0 0.0
        %1596 = vmatpush1.msra.mxu0 %v1561
        %1597 = vmatprep.subr.mxu0 0.0
        %1598 = vmatpush1.msra.mxu0 %v1562
        %1599 = vmatprep.subr.mxu0 0.0
        %1600 = vmatpush1.msra.mxu0 %v1563
        %1601 = vmatprep.subr.mxu0 0.0
        %1602 = vmatpush1.msra.mxu0 %v1564
        %1603 = vmatprep.subr.mxu0 0.0
        %1604 = vmatpush1.msra.mxu0 %v1565
        %1605 = vmatprep.subr.mxu0 0.0
        %1606 = vmatpush1.msra.mxu0 %v1566
        %1607 = vmatprep.subr.mxu0 0.0
        %1608 = vmatpush1.msra.mxu0 %v1567
        %1609 = vmatprep.subr.mxu0 0.0
        %1610 = vmatpush1.msra.mxu0 %v1568
        %1611 = vmatprep.subr.mxu0 0.0
        %1612 = vmatpush1.msra.mxu0 %v1569
        %1613 = vmatprep.subr.mxu0 0.0
        %1614 = vmatpush1.msra.mxu0 %v1570
        %1615 = vmatprep.subr.mxu0 0.0
        %1616 = vmatpush1.msra.mxu0 %v1571
        %1617 = vmatprep.subr.mxu0 0.0
        %1618 = vmatpush1.msra.mxu0 %v1572
        %1619 = vmatprep.subr.mxu0 0.0
        %1620 = vmatpush1.msra.mxu0 %v1573
        %1621 = vmatprep.subr.mxu0 0.0
        %1622 = vmatpush1.msra.mxu0 %v1574
        %1623 = vmatprep.subr.mxu0 0.0
        %1624 = vmatpush1.msra.mxu0 %v1575
        %1625 = vmatprep.subr.mxu0 0.0
        %1626 = vmatpush1.msra.mxu0 0.0
        %1627 = vmatprep.subr.mxu0 0.0
        %1628 = vmatpush1.msra.mxu0 0.0
        %1629 = vmatprep.subr.mxu0 0.0
        %1630 = vmatpush1.msra.mxu0 0.0
        %1631 = vmatprep.subr.mxu0 0.0
        %1632 = vmatpush1.msra.mxu0 0.0
        %1633 = vmatprep.subr.mxu0 0.0
        %1634 = vmatpush1.msra.mxu0 0.0
        %1635 = vmatprep.subr.mxu0 0.0
        %1636 = vmatpush1.msra.mxu0 0.0
        %1637 = vmatprep.subr.mxu0 0.0
        %1638 = vmatpush1.msra.mxu0 0.0
        %1639 = vmatprep.subr.mxu0 0.0
        %1640 = vmatpush1.msra.mxu0 0.0
        %1641 = vmatprep.subr.mxu0 0.0
        %1642 = vmatpush1.msra.mxu0 0.0
        %1643 = vmatprep.subr.mxu0 0.0
        %1644 = vmatpush1.msra.mxu0 0.0
        %1645 = vmatprep.subr.mxu0 0.0
        %1646 = vmatpush1.msra.mxu0 0.0
        %1647 = vmatprep.subr.mxu0 0.0
        %1648 = vmatpush1.msra.mxu0 0.0
        %1649 = vmatprep.subr.mxu0 0.0
        %1650 = vmatpush1.msra.mxu0 0.0
        %1651 = vmatprep.subr.mxu0 0.0
        %1652 = vmatpush1.msra.mxu0 0.0
        %1653 = vmatprep.subr.mxu0 0.0
        %1654 = vmatpush1.msra.mxu0 0.0
        %1655 = vmatprep.subr.mxu0 0.0
        %1656 = vmatpush1.msra.mxu0 0.0
        %1657 = vmatprep.mubr.f32.mxu0 0.0
        %1658 = vmatmul.mubr.f32.gmra.mrb[0].mxu0 %v1555
        %v1659 = vpop.f32.mrb[0].mxu0
        %v1660 = vadd.f32 0.0, %v1659
        %v1661 = vpop.f32.mrb[0].mxu0
        %1662 = vmatprep.mubr.f32.mxu0 0.0
        %1663 = vmatmul.mubr.f32.gmra.mrb[0].mxu0 %v1556
        %v1664 = vpop.f32.mrb[0].mxu0
        %v1665 = vadd.f32 0.0, %v1664
        %v1666 = vpop.f32.mrb[0].mxu0
        %1667 = vdwg.mxu0
        %v1668 = vxor.u32 %v1660, 2147483648
        %v1669 = vmul.f32 %v1668, 1.442695
        %v1670 = vpow.pop %v1669
        %v1671 = vadd.f32 %v1670, 1.0
        %v1672 = vrcp.pop %v1671
        %v1673 = vmul.f32 1.0, %v1672
        %v1674 = vsub.f32 1.0, %v1673
        %v1675 = vunpack.c.l.bf16 %v1557
        %v1676 = vunpack.c.l.bf16 %v1558
        %1679 = vrot.lane.b32.xlu0 %v1660, 127
        %v1680 = vpop.permute.xlu0 %1679
        %1681 = vrot.lane.b32.xlu0 %v1665, 127
        %v1682 = vpop.permute.xlu0 %1681
        %1685 = vxpose.xlu0.b32.start [1/16] %v1680, 128
        %1686 = vxpose.xlu0.b32.cont [2/16] %v1682, 128
        %1687 = vxpose.xlu0.b32.cont [3/16] 0.0, 128
        %1688 = vxpose.xlu0.b32.cont [4/16] 0.0, 128
        %1689 = vxpose.xlu0.b32.cont [5/16] 0.0, 128
        %1690 = vxpose.xlu0.b32.cont [6/16] 0.0, 128
        %1691 = vxpose.xlu0.b32.cont [7/16] 0.0, 128
        %1692 = vxpose.xlu0.b32.cont [8/16] 0.0, 128
        %1693 = vxpose.xlu0.b32.cont [9/16] 0.0, 128
        %1694 = vxpose.xlu0.b32.cont [10/16] 0.0, 128
        %1695 = vxpose.xlu0.b32.cont [11/16] 0.0, 128
        %1696 = vxpose.xlu0.b32.cont [12/16] 0.0, 128
        %1697 = vxpose.xlu0.b32.cont [13/16] 0.0, 128
        %1698 = vxpose.xlu0.b32.cont [14/16] 0.0, 128
        %1699 = vxpose.xlu0.b32.cont [15/16] 0.0, 128
        %1700 = vxpose.xlu0.b32.end [16/16] 0.0, 128
        %v1701 = vpop.trf.xlu0
        %v1702 = vpop.trf.xlu0
        %v1703 = vpop.trf.xlu0
        %v1704 = vpop.trf.xlu0
        %v1705 = vpop.trf.xlu0
        %v1706 = vpop.trf.xlu0
        %v1707 = vpop.trf.xlu0
        %v1708 = vpop.trf.xlu0
        %v1709 = vpop.trf.xlu0
        %v1710 = vpop.trf.xlu0
        %v1711 = vpop.trf.xlu0
        %v1712 = vpop.trf.xlu0
        %v1713 = vpop.trf.xlu0
        %v1714 = vpop.trf.xlu0
        %v1715 = vpop.trf.xlu0
        %v1716 = vpop.trf.xlu0
        %1717 = vset.pattern.permute.xlu0 2
        %1718 = vperm.xlu0 %1717, %v1660
        %v1719 = vpop.permute.xlu0 %1718
        %v1721 = vlaneseq
        %v1722 = vshrl.u32 %v1721, 7
        %v1723 = vsub.s32 0, %v1722
        %v1724 = vrot.slane %v1701, %v1723
        %v1725 = vadd.f32 %v1719, %v1724
        %v1726 = vxor.u32 %v1725, 2147483648
        %v1727 = vmul.f32 %v1726, 1.442695
        %v1728 = vpow.pop %v1727
        %v1729 = vadd.f32 %v1728, 1.0
        %v1730 = vrcp.pop %v1729
        %v1731 = vmul.f32 1.0, %v1730
        %v1732 = vmul.f32 %v1675, %v1731
        %v1733 = vsub.f32 %v1675, %v1732
        %1734 = vrot.lane.b32.xlu0 %v1660, 125
        %v1735 = vpop.permute.xlu0 %1734
        %1736 = vrot.lane.b32.xlu0 %v1665, 125
        %v1737 = vpop.permute.xlu0 %1736
        %1740 = vxpose.xlu0.b32.start [1/16] %v1735, 128
        %1741 = vxpose.xlu0.b32.cont [2/16] %v1737, 128
        %1742 = vxpose.xlu0.b32.cont [3/16] 0.0, 128
        %1743 = vxpose.xlu0.b32.cont [4/16] 0.0, 128
        %1744 = vxpose.xlu0.b32.cont [5/16] 0.0, 128
        %1745 = vxpose.xlu0.b32.cont [6/16] 0.0, 128
        %1746 = vxpose.xlu0.b32.cont [7/16] 0.0, 128
        %1747 = vxpose.xlu0.b32.cont [8/16] 0.0, 128
        %1748 = vxpose.xlu0.b32.cont [9/16] 0.0, 128
        %1749 = vxpose.xlu0.b32.cont [10/16] 0.0, 128
        %1750 = vxpose.xlu0.b32.cont [11/16] 0.0, 128
        %1751 = vxpose.xlu0.b32.cont [12/16] 0.0, 128
        %1752 = vxpose.xlu0.b32.cont [13/16] 0.0, 128
        %1753 = vxpose.xlu0.b32.cont [14/16] 0.0, 128
        %1754 = vxpose.xlu0.b32.cont [15/16] 0.0, 128
        %1755 = vxpose.xlu0.b32.end [16/16] 0.0, 128
        %v1756 = vpop.trf.xlu0
        %v1757 = vpop.trf.xlu0
        %v1758 = vpop.trf.xlu0
        %v1759 = vpop.trf.xlu0
        %v1760 = vpop.trf.xlu0
        %v1761 = vpop.trf.xlu0
        %v1762 = vpop.trf.xlu0
        %v1763 = vpop.trf.xlu0
        %v1764 = vpop.trf.xlu0
        %v1765 = vpop.trf.xlu0
        %v1766 = vpop.trf.xlu0
        %v1767 = vpop.trf.xlu0
        %v1768 = vpop.trf.xlu0
        %v1769 = vpop.trf.xlu0
        %v1770 = vpop.trf.xlu0
        %v1771 = vpop.trf.xlu0
        %1772 = vset.pattern.permute.xlu0 4
        %1773 = vperm.xlu0 %1772, %v1660
        %v1774 = vpop.permute.xlu0 %1773
        %v1776 = vlaneseq
        %v1777 = vshrl.u32 %v1776, 7
        %v1778 = vsub.s32 0, %v1777
        %v1779 = vrot.slane %v1756, %v1778
        %v1780 = vadd.f32 %v1774, %v1779
        %v1781 = vxor.u32 %v1780, 2147483648
        %v1782 = vmul.f32 %v1781, 1.442695
        %v1783 = vpow.pop %v1782
        %v1784 = vadd.f32 %v1783, 1.0
        %v1785 = vrcp.pop %v1784
        %v1786 = vmul.f32 1.0, %v1785
        %v1787 = vmul.f32 %v1676, %v1786
        %v1789 = vsel %vm934, %v1732, 0
        %v1792 = vsel %vm934, %v1733, 0
        %v1795 = vsel %vm934, %v1787, 0
        %1797 = vmatprep.subr.mxu0 0.0
        %1798 = vmatpush1.msra.mxu0 %v1555
        %1799 = vmatprep.subr.mxu0 0.0
        %1800 = vmatpush1.msra.mxu0 %v1556
        %1801 = vmatprep.subr.mxu0 0.0
        %1802 = vmatpush1.msra.mxu0 0.0
        %1803 = vmatprep.subr.mxu0 0.0
        %1804 = vmatpush1.msra.mxu0 0.0
        %1805 = vmatprep.subr.mxu0 0.0
        %1806 = vmatpush1.msra.mxu0 0.0
        %1807 = vmatprep.subr.mxu0 0.0
        %1808 = vmatpush1.msra.mxu0 0.0
        %1809 = vmatprep.subr.mxu0 0.0
        %1810 = vmatpush1.msra.mxu0 0.0
        %1811 = vmatprep.subr.mxu0 0.0
        %1812 = vmatpush1.msra.mxu0 0.0
        %1813 = vmatprep.subr.mxu0 0.0
        %1814 = vmatpush1.msra.mxu0 0.0
        %1815 = vmatprep.subr.mxu0 0.0
        %1816 = vmatpush1.msra.mxu0 0.0
        %1817 = vmatprep.subr.mxu0 0.0
        %1818 = vmatpush1.msra.mxu0 0.0
        %1819 = vmatprep.subr.mxu0 0.0
        %1820 = vmatpush1.msra.mxu0 0.0
        %1821 = vmatprep.subr.mxu0 0.0
        %1822 = vmatpush1.msra.mxu0 0.0
        %1823 = vmatprep.subr.mxu0 0.0
        %1824 = vmatpush1.msra.mxu0 0.0
        %1825 = vmatprep.subr.mxu0 0.0
        %1826 = vmatpush1.msra.mxu0 0.0
        %1827 = vmatprep.subr.mxu0 0.0
        %1828 = vmatpush1.msra.mxu0 0.0
        %1829 = vmatprep.subr.mxu0 0.0
        %1830 = vmatpush1.msra.mxu0 0.0
        %1831 = vmatprep.subr.mxu0 0.0
        %1832 = vmatpush1.msra.mxu0 0.0
        %1833 = vmatprep.subr.mxu0 0.0
        %1834 = vmatpush1.msra.mxu0 0.0
        %1835 = vmatprep.subr.mxu0 0.0
        %1836 = vmatpush1.msra.mxu0 0.0
        %1837 = vmatprep.subr.mxu0 0.0
        %1838 = vmatpush1.msra.mxu0 0.0
        %1839 = vmatprep.subr.mxu0 0.0
        %1840 = vmatpush1.msra.mxu0 0.0
        %1841 = vmatprep.subr.mxu0 0.0
        %1842 = vmatpush1.msra.mxu0 0.0
        %1843 = vmatprep.subr.mxu0 0.0
        %1844 = vmatpush1.msra.mxu0 0.0
        %1845 = vmatprep.subr.mxu0 0.0
        %1846 = vmatpush1.msra.mxu0 0.0
        %1847 = vmatprep.subr.mxu0 0.0
        %1848 = vmatpush1.msra.mxu0 0.0
        %1849 = vmatprep.subr.mxu0 0.0
        %1850 = vmatpush1.msra.mxu0 0.0
        %1851 = vmatprep.subr.mxu0 0.0
        %1852 = vmatpush1.msra.mxu0 0.0
        %1853 = vmatprep.subr.mxu0 0.0
        %1854 = vmatpush1.msra.mxu0 0.0
        %1855 = vmatprep.subr.mxu0 0.0
        %1856 = vmatpush1.msra.mxu0 0.0
        %1857 = vmatprep.subr.mxu0 0.0
        %1858 = vmatpush1.msra.mxu0 0.0
        %1859 = vmatprep.subr.mxu0 0.0
        %1860 = vmatpush1.msra.mxu0 0.0
        %1861 = vmatprep.mubr.f32.mxu0 0.0
        %1862 = vmatmul.mubr.f32.gmra.mrb[0].mxu0 %v1789
        %v1863 = vpop.f32.mrb[0].mxu0
        %v1864 = vadd.f32 0.0, %v1863
        %v1865 = vpop.f32.mrb[0].mxu0
        %1866 = vmatprep.mubr.f32.mxu0 0.0
        %1867 = vmatmul.mubr.f32.gmra.mrb[0].mxu0 %v1792
        %v1868 = vpop.f32.mrb[0].mxu0
        %v1869 = vadd.f32 0.0, %v1868
        %v1870 = vpop.f32.mrb[0].mxu0
        %1871 = vmatprep.mubr.f32.mxu0 0.0
        %1872 = vmatmul.mubr.f32.gmra.mrb[0].mxu0 %v1795
        %v1873 = vpop.f32.mrb[0].mxu0
        %v1874 = vadd.f32 0.0, %v1873
        %v1875 = vpop.f32.mrb[0].mxu0
        %1876 = vdwg.mxu0
        %v1877 = vsel %vm934, %v1732, 0.0
        %1878 = vadd.xlane.f32.xlu0 %v1877
        %v1879 = vpop.xlane.xlu0 %1878
        %v1881 = vlaneseq
        %v1882 = vshrl.u32 %v1881, 7
        %v1883 = vsub.s32 0, %v1882
        %v1884 = vrot.slane %v1592, %v1883
        %v1886 = vmul.f32 %v1879, %v1884
        %1887 = vmatprep.subr.mxu0 0.0
        %1888 = vmatpush1.msra.mxu0 %v1576
        %1889 = vmatprep.subr.mxu0 0.0
        %1890 = vmatpush1.msra.mxu0 %v1577
        %1891 = vmatprep.subr.mxu0 0.0
        %1892 = vmatpush1.msra.mxu0 %v1578
        %1893 = vmatprep.subr.mxu0 0.0
        %1894 = vmatpush1.msra.mxu0 %v1579
        %1895 = vmatprep.subr.mxu0 0.0
        %1896 = vmatpush1.msra.mxu0 %v1580
        %1897 = vmatprep.subr.mxu0 0.0
        %1898 = vmatpush1.msra.mxu0 %v1581
        %1899 = vmatprep.subr.mxu0 0.0
        %1900 = vmatpush1.msra.mxu0 %v1582
        %1901 = vmatprep.subr.mxu0 0.0
        %1902 = vmatpush1.msra.mxu0 %v1583
        %1903 = vmatprep.subr.mxu0 0.0
        %1904 = vmatpush1.msra.mxu0 %v1584
        %1905 = vmatprep.subr.mxu0 0.0
        %1906 = vmatpush1.msra.mxu0 %v1585
        %1907 = vmatprep.subr.mxu0 0.0
        %1908 = vmatpush1.msra.mxu0 %v1586
        %1909 = vmatprep.subr.mxu0 0.0
        %1910 = vmatpush1.msra.mxu0 %v1587
        %1911 = vmatprep.subr.mxu0 0.0
        %1912 = vmatpush1.msra.mxu0 %v1588
        %1913 = vmatprep.subr.mxu0 0.0
        %1914 = vmatpush1.msra.mxu0 %v1589
        %1915 = vmatprep.subr.mxu0 0.0
        %1916 = vmatpush1.msra.mxu0 %v1590
        %1917 = vmatprep.subr.mxu0 0.0
        %1918 = vmatpush1.msra.mxu0 %v1591
        %1919 = vmatprep.subr.mxu0 0.0
        %1920 = vmatpush1.msra.mxu0 0.0
        %1921 = vmatprep.subr.mxu0 0.0
        %1922 = vmatpush1.msra.mxu0 0.0
        %1923 = vmatprep.subr.mxu0 0.0
        %1924 = vmatpush1.msra.mxu0 0.0
        %1925 = vmatprep.subr.mxu0 0.0
        %1926 = vmatpush1.msra.mxu0 0.0
        %1927 = vmatprep.subr.mxu0 0.0
        %1928 = vmatpush1.msra.mxu0 0.0
        %1929 = vmatprep.subr.mxu0 0.0
        %1930 = vmatpush1.msra.mxu0 0.0
        %1931 = vmatprep.subr.mxu0 0.0
        %1932 = vmatpush1.msra.mxu0 0.0
        %1933 = vmatprep.subr.mxu0 0.0
        %1934 = vmatpush1.msra.mxu0 0.0
        %1935 = vmatprep.subr.mxu0 0.0
        %1936 = vmatpush1.msra.mxu0 0.0
        %1937 = vmatprep.subr.mxu0 0.0
        %1938 = vmatpush1.msra.mxu0 0.0
        %1939 = vmatprep.subr.mxu0 0.0
        %1940 = vmatpush1.msra.mxu0 0.0
        %1941 = vmatprep.subr.mxu0 0.0
        %1942 = vmatpush1.msra.mxu0 0.0
        %1943 = vmatprep.subr.mxu0 0.0
        %1944 = vmatpush1.msra.mxu0 0.0
        %1945 = vmatprep.subr.mxu0 0.0
        %1946 = vmatpush1.msra.mxu0 0.0
        %1947 = vmatprep.subr.mxu0 0.0
        %1948 = vmatpush1.msra.mxu0 0.0
        %1949 = vmatprep.subr.mxu0 0.0
        %1950 = vmatpush1.msra.mxu0 0.0
        %1951 = vmatprep.mubr.f32.mxu0 0.0
        %1952 = vmatmul.mubr.f32.gmra.mrb[0].mxu0 %v1864
        %v1953 = vpop.f32.mrb[0].mxu0
        %v1954 = vadd.f32 %v1886, %v1953
        %v1955 = vpop.f32.mrb[0].mxu0
        %1956 = vdwg.mxu0
        %1958 = vset.pattern.permute.xlu0 0
        %1959 = vperm.xlu0 %1958, %v1559
        %v1960 = vpop.permute.xlu0 %1959
        %v1962 = vmul.f32 %v1954, %v1960
        %v1963 = vmax.f32 %v1962, 0.0
        %1965 = vset.pattern.permute.xlu0 0
        %1966 = vperm.xlu0 %1965, %v1673
        %v1967 = vpop.permute.xlu0 %1966
        %v1969 = vmul.f32 %v1967, %v1555
        %v1970 = vadd.f32 %v1963, %v1969
        %v1971 = vmul.f32 %v1869, %v1874
        %v1972 = vmax.f32 %v1971, 0.0
        %1974 = vset.pattern.permute.xlu0 0
        %1975 = vperm.xlu0 %1974, %v1674
        %v1976 = vpop.permute.xlu0 %1975
        %v1978 = vmul.f32 %v1976, %v1555
        %v1979 = vadd.f32 %v1972, %v1978
        %v1980 = vadd.f32 %v1970, %v1979
        %v1981 = vmul.f32 %v1980, 0.5
        %v1982 = vld [vmem:[%s757] sm:$0xff]
        %v1983 = vld [vmem:[%s757 + $0x8] sm:$0xff]
        %v1984 = vld [vmem:[%s757 + $0x10] sm:$0xff]
        %v1985 = vld [vmem:[%s757 + $0x18] sm:$0xff]
        %v1986 = vld [vmem:[%s757 + $0x20] sm:$0xff]
        %v1987 = vld [vmem:[%s757 + $0x28] sm:$0xff]
        %v1988 = vld [vmem:[%s757 + $0x30] sm:$0xff]
        %v1989 = vld [vmem:[%s757 + $0x38] sm:$0xff]
        %v1990 = vld [vmem:[%s757 + $0x40] sm:$0xff]
        %v1991 = vld [vmem:[%s757 + $0x48] sm:$0xff]
        %v1992 = vld [vmem:[%s757 + $0x50] sm:$0xff]
        %v1993 = vld [vmem:[%s757 + $0x58] sm:$0xff]
        %v1994 = vld [vmem:[%s757 + $0x60] sm:$0xff]
        %v1995 = vld [vmem:[%s757 + $0x68] sm:$0xff]
        %v1996 = vld [vmem:[%s757 + $0x70] sm:$0xff]
        %v1997 = vld [vmem:[%s757 + $0x78] sm:$0xff]
        %v1998 = vld [vmem:[%s921] sm:$0x1]
        %v2000 = vlaneseq
        %v2001 = vshrl.u32 %v2000, 7
        %v2002 = vsub.s32 0, %v2001
        %v2003 = vrot.slane %v1998, %v2002
        %2005 = vmatprep.subr.mxu0 0.0
        %2006 = vmatpush1.msra.mxu0 %v1982
        %2007 = vmatprep.subr.mxu0 0.0
        %2008 = vmatpush1.msra.mxu0 %v1983
        %2009 = vmatprep.subr.mxu0 0.0
        %2010 = vmatpush1.msra.mxu0 %v1984
        %2011 = vmatprep.subr.mxu0 0.0
        %2012 = vmatpush1.msra.mxu0 %v1985
        %2013 = vmatprep.subr.mxu0 0.0
        %2014 = vmatpush1.msra.mxu0 %v1986
        %2015 = vmatprep.subr.mxu0 0.0
        %2016 = vmatpush1.msra.mxu0 %v1987
        %2017 = vmatprep.subr.mxu0 0.0
        %2018 = vmatpush1.msra.mxu0 %v1988
        %2019 = vmatprep.subr.mxu0 0.0
        %2020 = vmatpush1.msra.mxu0 %v1989
        %2021 = vmatprep.subr.mxu0 0.0
        %2022 = vmatpush1.msra.mxu0 %v1990
        %2023 = vmatprep.subr.mxu0 0.0
        %2024 = vmatpush1.msra.mxu0 %v1991
        %2025 = vmatprep.subr.mxu0 0.0
        %2026 = vmatpush1.msra.mxu0 %v1992
        %2027 = vmatprep.subr.mxu0 0.0
        %2028 = vmatpush1.msra.mxu0 %v1993
        %2029 = vmatprep.subr.mxu0 0.0
        %2030 = vmatpush1.msra.mxu0 %v1994
        %2031 = vmatprep.subr.mxu0 0.0
        %2032 = vmatpush1.msra.mxu0 %v1995
        %2033 = vmatprep.subr.mxu0 0.0
        %2034 = vmatpush1.msra.mxu0 %v1996
        %2035 = vmatprep.subr.mxu0 0.0
        %2036 = vmatpush1.msra.mxu0 %v1997
        %2037 = vmatprep.subr.mxu0 0.0
        %2038 = vmatpush1.msra.mxu0 0.0
        %2039 = vmatprep.subr.mxu0 0.0
        %2040 = vmatpush1.msra.mxu0 0.0
        %2041 = vmatprep.subr.mxu0 0.0
        %2042 = vmatpush1.msra.mxu0 0.0
        %2043 = vmatprep.subr.mxu0 0.0
        %2044 = vmatpush1.msra.mxu0 0.0
        %2045 = vmatprep.subr.mxu0 0.0
        %2046 = vmatpush1.msra.mxu0 0.0
        %2047 = vmatprep.subr.mxu0 0.0
        %2048 = vmatpush1.msra.mxu0 0.0
        %2049 = vmatprep.subr.mxu0 0.0
        %2050 = vmatpush1.msra.mxu0 0.0
        %2051 = vmatprep.subr.mxu0 0.0
        %2052 = vmatpush1.msra.mxu0 0.0
        %2053 = vmatprep.subr.mxu0 0.0
        %2054 = vmatpush1.msra.mxu0 0.0
        %2055 = vmatprep.subr.mxu0 0.0
        %2056 = vmatpush1.msra.mxu0 0.0
        %2057 = vmatprep.subr.mxu0 0.0
        %2058 = vmatpush1.msra.mxu0 0.0
        %2059 = vmatprep.subr.mxu0 0.0
        %2060 = vmatpush1.msra.mxu0 0.0
        %2061 = vmatprep.subr.mxu0 0.0
        %2062 = vmatpush1.msra.mxu0 0.0
        %2063 = vmatprep.subr.mxu0 0.0
        %2064 = vmatpush1.msra.mxu0 0.0
        %2065 = vmatprep.subr.mxu0 0.0
        %2066 = vmatpush1.msra.mxu0 0.0
        %2067 = vmatprep.subr.mxu0 0.0
        %2068 = vmatpush1.msra.mxu0 0.0
        %2069 = vmatprep.mubr.f32.mxu0 0.0
        %2070 = vmatmul.mubr.f32.gmra.mrb[0].mxu0 %v1981
        %v2071 = vpop.f32.mrb[0].mxu0
        %v2072 = vadd.f32 %v2003, %v2071
        %v2073 = vpop.f32.mrb[0].mxu0
        %2074 = vdwg.mxu0
        %2075 = vst [vmem:[%s873] sm:$0xff] %v2072
        %s2076 = sand.u32 %s489, 1
        %s2077 = scalar_lea.sflag [#allocation4], %s2076
        %s2078 = sand.u32 %s489, 1
        %s2079 = smul.addr %s2078, 8
        %s2080 = scalar_lea.vmem [#allocation11], %s2079
        // Predicated region
        $region109: #{tpu_custom_call.1} parent=87 // pred_check
          %p2081 = pneg %p499
        $region110: #{tpu_custom_call.1} parent=87 // pred_check_branch
          %2083 = sbr.rel (%p2081) target = $region112
        $region111: #{tpu_custom_call.1} parent=87 // pred_region
          %s2085 = ssub.s32 128, 128
          %2086 = vsyncadd %s2077, %s2085
          %s2087 = smul.addr %s40, 128
          %s2088 = scalar_lea.hbm %s17, %s2087
          %s2090 = sshll.u32 %s2080, 4
          %s2091 = int_to_ptr.vmem [resolvable:$true] %s2090
          %2093 = dma.vmem_to_hbm [thread:$0]  %s2091, 128, %s2088, %s2077
        $region112: #{tpu_custom_call.1} parent=87 // pred_fallthru
          _
      $region88: #{tpu_custom_call.1} parent=5 // pred_fallthru
        _
      %p2094 = scmp.le.s32.totalorder 2, %s35
      // Predicated region
      $region113: #{tpu_custom_call.1} parent=5 // pred_check
        %p2095 = pneg %p2094
      $region114: #{tpu_custom_call.1} parent=5 // pred_check_branch
        %2097 = sbr.rel (%p2095) target = $region116
      $region115: #{tpu_custom_call.1} parent=5 // pred_region
        %s2098 = ssub.s32 %s35, 2
        // Predicated region
        $region117: #{tpu_custom_call.1} parent=115 // pred_check
          %p2099 = pneg %p505
        $region118: #{tpu_custom_call.1} parent=115 // pred_check_branch
          %2101 = sbr.rel (%p2099) target = $region120
        $region119: #{tpu_custom_call.1} parent=115 // pred_region
          %s2102 = sand.u32 %s490, 1
          %s2103 = scalar_lea.sflag [#allocation4], %s2102
          %s2104 = sand.u32 %s490, 1
          %s2105 = smul.addr %s2104, 8
          %s2106 = scalar_lea.vmem [#allocation11], %s2105
          %2107 = dma.done %s2103, 128
        $region120: #{tpu_custom_call.1} parent=115 // pred_fallthru
          _
      $region116: #{tpu_custom_call.1} parent=5 // pred_fallthru
        _
    $region6: #{tpu_custom_call.1} parent=1 // loop_footer
      %s39 = sadd.s32 1, %s35
    $region7: #{tpu_custom_call.1} parent=1 // loop_footer_branch
      %34 = sbr.rel target = $region3
    $region8: #{tpu_custom_call.1} parent=1 // loop_exit
      _
    %2108 = vsyncpa [#allocation3], 1
    %s2109 = scalar_lea.sflag [#allocation3], 1
    %2110 = vsyncpa %s2109, 1
    %2111 = vsyncpa [#allocation6], 1
    %s2112 = scalar_lea.sflag [#allocation6], 1
    %2113 = vsyncpa %s2112, 1
    %2114 = vsyncpa [#allocation9], 1
    %s2115 = scalar_lea.sflag [#allocation9], 1
    %2116 = vsyncpa %s2115, 1
    %2117 = vsyncpa [#allocation4], 1
    %s2118 = scalar_lea.sflag [#allocation4], 1
    %2119 = vsyncpa %s2118, 1

</llo_original>
